<compile_context>
chip_gen: v7x
topology: tpu7x:2x2x1
jax: 0.10.0
libtpu: 0.0.40
codegen_flags: <defaults>
</compile_context>

<pallas_src>
import jax
import jax.numpy as jnp
from jax import lax
from jax.experimental import pallas as pl
from jax.experimental.pallas import tpu as pltpu

_BN_EPS = 1e-5


def _make_msconv_kernel(cin, oc3, cout, H, W, batch_block):
    HW = H * W
    PAD = 2  # halo of the largest (5x5) conv
    w_pow2 = (W & (W - 1)) == 0

    def kernel(x_ref, w1_ref, b1_ref, w3_ref, b3_ref, w5_ref, b5_ref,
               wp_ref, bp_ref, out_ref):
        # ---- boundary-validity masks on the flattened H*W lane axis --------
        # Output pixel (y, x) with tap offset (oy, ox) reads input (y+oy, x+ox).
        # In flat-index terms (f = y*W + x):
        #   0 <= y+oy < H   <=>   -oy*W <= f < (H-oy)*W        (no division)
        #   0 <= x+ox < W   <=>   -ox   <= (f mod W) < W-ox
        fidx = lax.broadcasted_iota(jnp.int32, (1, HW), 1)
        xcol = (fidx & (W - 1)) if w_pow2 else (fidx % W)
        ymask, xmask = {}, {}
        for o in range(-PAD, PAD + 1):
            if o == 0:
                continue
            ymask[o] = (fidx >= -o * W) & (fidx < (H - o) * W)
            xmask[o] = (xcol >= -o) & (xcol < W - o)

        def conv_stage(src, w_ref, b_ref, n_out, k, n_acc=2):
            """'same' k x k conv + folded-BN bias + ReLU.

            src   : (n_in, HW) slab (channels on sublanes, flat H*W on lanes).
            w_ref : VMEM (n_in, n_out*k*k); column co*k*k + dy*k + dx holds
                    w[co, :, dy, dx], used as a (n_in, 1) lane-broadcast column.
            b_ref : SMEM (n_out,) folded bias.
            Returns n_out planes of shape (1, HW).
            """
            p = k // 2
            kk = k * k
            accs = [[None] * n_acc for _ in range(n_out)]
            t = 0
            for dy in range(k):
                oy = dy - p
                for dx in range(k):
                    ox = dx - p
                    shift = oy * W + ox
                    # One roll + one mask per tap, shared by all in/out channels.
                    rolled = src if shift == 0 else pltpu.roll(
                        src, (-shift) % HW, 1)
                    m = None
                    if oy != 0:
                        m = ymask[oy]
                    if ox != 0:
                        m = xmask[ox] if m is None else (m & xmask[ox])
                    rm = rolled if m is None else jnp.where(m, rolled, 0.0)
                    for co in range(n_out):
                        c0 = co * kk + dy * k + dx
                        col = w_ref[:, c0:c0 + 1]          # (n_in, 1)
                        term = col * rm                    # dense (n_in, HW)
                        slot = t % n_acc
                        prev = accs[co][slot]
                        accs[co][slot] = term if prev is None else prev + term
                    t += 1
            outs = []
            for co in range(n_out):
                parts = [a for a in accs[co] if a is not None]
                while len(parts) > 1:                      # tree-sum partials
                    nxt = [parts[i] + parts[i + 1]
                           for i in range(0, len(parts) - 1, 2)]
                    if len(parts) % 2:
                        nxt.append(parts[-1])
                    parts = nxt
                plane = jnp.sum(parts[0], axis=0, keepdims=True) + b_ref[co]
                outs.append(jnp.maximum(plane, 0.0))
            return outs

        for bi in range(batch_block):
            xs = x_ref[bi]                                          # (cin, HW)
            out1 = conv_stage(xs, w1_ref, b1_ref, oc3, 1)
            cat1 = jnp.concatenate([xs] + out1, axis=0)             # (cin+oc3, HW)
            out2 = conv_stage(cat1, w3_ref, b3_ref, oc3, 3)
            cat2 = jnp.concatenate([cat1] + out2, axis=0)           # (cin+2oc3, HW)
            out3 = conv_stage(cat2, w5_ref, b5_ref, oc3, 5)
            cat3 = jnp.concatenate(out1 + out2 + out3, axis=0)      # (3*oc3, HW)
            outp = conv_stage(cat3, wp_ref, bp_ref, cout, 1)
            # Single lane-dense store of the whole (cout, HW) output slab.
            out_ref[bi] = jnp.concatenate(outp, axis=0)

    return kernel


def _fold_bn_into_conv(w, b, gamma, beta, mean, var, eps=_BN_EPS):
    """bn(conv(x; w, b)) == conv(x; w*s, (b-mean)*s + beta), s=gamma*rsqrt(var+eps)."""
    s = gamma * lax.rsqrt(var + eps)
    return w * s[:, None, None, None], (b - mean) * s + beta


def _weight_columns(w):
    """(n_out, n_in, k, k) -> (n_in, n_out*k*k) column table for the kernel."""
    n_out, n_in, kh, kw = w.shape
    return jnp.transpose(w.reshape(n_out, n_in, kh * kw), (1, 0, 2)).reshape(
        n_in, n_out * kh * kw)


def multi_scale_conv_forward(x, params, *, batch_block=1):
    """x: (B, Cin, H, W) float32 NCHW -> (B, out_channels, H, W) float32."""
    B, cin, H, W = x.shape
    assert B % batch_block == 0
    HW = H * W

    w1, b1 = _fold_bn_into_conv(params["w1"], params["b1"], params["g1"],
                                params["bt1"], params["m1"], params["v1"])
    w3, b3 = _fold_bn_into_conv(params["w3"], params["b3"], params["g3"],
                                params["bt3"], params["m3"], params["v3"])
    w5, b5 = _fold_bn_into_conv(params["w5"], params["b5"], params["g5"],
                                params["bt5"], params["m5"], params["v5"])
    wp, bp = _fold_bn_into_conv(params["wp"], params["bp"], params["gp"],
                                params["btp"], params["mp"], params["vp"])
    oc3, cout = w1.shape[0], wp.shape[0]

    w1c, w3c = _weight_columns(w1), _weight_columns(w3)
    w5c, wpc = _weight_columns(w5), _weight_columns(wp)

    x_flat = x.reshape(B, cin, HW)          # collapse of minor dims: no copy
    kernel = _make_msconv_kernel(cin, oc3, cout, H, W, batch_block)

    smem = pl.BlockSpec(memory_space=pltpu.MemorySpace.SMEM)

    def full(a):  # whole small weight table resident in VMEM (constant block)
        return pl.BlockSpec(a.shape, lambda b, _nd=a.ndim: (0,) * _nd)

    out = pl.pallas_call(
        kernel,
        out_shape=jax.ShapeDtypeStruct((B, cout, HW), jnp.float32),
        grid=(B // batch_block,),
        in_specs=[
            pl.BlockSpec((batch_block, cin, HW), lambda b: (b, 0, 0)),
            full(w1c), smem, full(w3c), smem, full(w5c), smem, full(wpc), smem,
        ],
        out_specs=pl.BlockSpec((batch_block, cout, HW), lambda b: (b, 0, 0)),
        compiler_params=pltpu.CompilerParams(
            dimension_semantics=("parallel",),
            vmem_limit_bytes=32 * 1024 * 1024,  # fits v7x's 64 MiB with headroom
        ),
    )(x_flat, w1c, b1, w3c, b3, w5c, b5, wpc, bp)
    return out.reshape(B, cout, H, W)


# ----------------------------- pure-JAX reference ---------------------------
def _conv_bn_relu_ref(x, w, b, g, bt, m, v, eps=_BN_EPS):
    kh, kw = int(w.shape[2]), int(w.shape[3])
    y = lax.conv_general_dilated(
        x, w, window_strides=(1, 1),
        padding=[(kh // 2, kh // 2), (kw // 2, kw // 2)],
        dimension_numbers=("NCHW", "OIHW", "NCHW"))
    y = y + b[None, :, None, None]
    y = (y - m[None, :, None, None]) * (g * lax.rsqrt(v + eps))[None, :, None, None] \
        + bt[None, :, None, None]
    return jnp.maximum(y, 0.0)


def multi_scale_conv_ref(x, p):
    out1 = _conv_bn_relu_ref(x, p["w1"], p["b1"], p["g1"], p["bt1"], p["m1"], p["v1"])
    cat1 = jnp.concatenate([x, out1], axis=1)
    out2 = _conv_bn_relu_ref(cat1, p["w3"], p["b3"], p["g3"], p["bt3"], p["m3"], p["v3"])
    cat2 = jnp.concatenate([x, out1, out2], axis=1)
    out3 = _conv_bn_relu_ref(cat2, p["w5"], p["b5"], p["g5"], p["bt5"], p["m5"], p["v5"])
    cat = jnp.concatenate([out1, out2, out3], axis=1)
    return _conv_bn_relu_ref(cat, p["wp"], p["bp"], p["gp"], p["btp"], p["mp"], p["vp"])


if __name__ == "__main__":
    B, Cin, H, W = 2, 4, 16, 16
    out_channels = 6
    oc3 = (out_channels // 3 * 3) // 3  # branch channels (= out_channels // 3)

    key = jax.random.PRNGKey(0)
    ks = list(jax.random.split(key, 25))
    x = jax.random.normal(ks[0], (B, Cin, H, W), dtype=jnp.float32)

    def conv_bn_params(keys, co, ci, k):
        kw_, kb, kg, kbt, km, kv = keys
        return dict(
            w=0.2 * jax.random.normal(kw_, (co, ci, k, k), dtype=jnp.float32),
            b=0.2 * jax.random.normal(kb, (co,), dtype=jnp.float32),
            g=1.0 + 0.1 * jax.random.normal(kg, (co,), dtype=jnp.float32),
            bt=0.1 * jax.random.normal(kbt, (co,), dtype=jnp.float32),
            m=0.1 * jax.random.normal(km, (co,), dtype=jnp.float32),
            v=jax.random.uniform(kv, (co,), jnp.float32, 0.5, 1.5),
        )

    p1 = conv_bn_params(ks[1:7], oc3, Cin, 1)
    p3 = conv_bn_params(ks[7:13], oc3, Cin + oc3, 3)
    p5 = conv_bn_params(ks[13:19], oc3, Cin + 2 * oc3, 5)
    pp = conv_bn_params(ks[19:25], out_channels, 3 * oc3, 1)

    params = {}
    for tag, p in (("1", p1), ("3", p3), ("5", p5), ("p", pp)):
        for name, val in p.items():
            params[name + tag] = val

    out = jax.jit(multi_scale_conv_forward)(x, params)
    out = jax.block_until_ready(out)

    ref = multi_scale_conv_ref(x, params)
    assert out.shape == (B, out_channels, H, W)
    max_err = float(jnp.max(jnp.abs(out - ref)))
    assert bool(jnp.allclose(out, ref, atol=5e-4, rtol=5e-4)), max_err

    print("KERNEL_OK")
</pallas_src>

<mosaic_0001>
module attributes {stable_mosaic.version = 11 : i64} {
  func.func @kernel(%arg0: i32, %arg1: memref<1x4x256xf32, #tpu.memory_space<vmem>>, %arg2: memref<4x2xf32, #tpu.memory_space<vmem>>, %arg3: memref<2xf32, #tpu.memory_space<smem>>, %arg4: memref<6x18xf32, #tpu.memory_space<vmem>>, %arg5: memref<2xf32, #tpu.memory_space<smem>>, %arg6: memref<8x50xf32, #tpu.memory_space<vmem>>, %arg7: memref<2xf32, #tpu.memory_space<smem>>, %arg8: memref<6x6xf32, #tpu.memory_space<vmem>>, %arg9: memref<6xf32, #tpu.memory_space<smem>>, %arg10: memref<1x6x256xf32, #tpu.memory_space<vmem>>) attributes {dimension_semantics = [#tpu.dimension_semantics<parallel>], iteration_bounds = array<i64: 2>, scalar_prefetch = 0 : i64, scratch_operands = 0 : i64, tpu.core_type = #tpu.core_type<tc>, window_params = [{transform_indices = @transform_0, window_bounds = array<i64: 1, 4, 256>}, {pipeline_mode = #tpu.pipeline_mode<synchronous>, transform_indices = @transform_1, window_bounds = array<i64: 4, 2>}, {transform_indices = @transform_2, window_bounds = array<i64: 2>}, {pipeline_mode = #tpu.pipeline_mode<synchronous>, transform_indices = @transform_3, window_bounds = array<i64: 6, 18>}, {transform_indices = @transform_4, window_bounds = array<i64: 2>}, {pipeline_mode = #tpu.pipeline_mode<synchronous>, transform_indices = @transform_5, window_bounds = array<i64: 8, 50>}, {transform_indices = @transform_6, window_bounds = array<i64: 2>}, {pipeline_mode = #tpu.pipeline_mode<synchronous>, transform_indices = @transform_7, window_bounds = array<i64: 6, 6>}, {transform_indices = @transform_8, window_bounds = array<i64: 6>}, {transform_indices = @transform_9, window_bounds = array<i64: 1, 6, 256>}]} {
    %0 = tpu.iota {dimensions = array<i32: 1>} : vector<1x256xi32>
    %c15_i32 = arith.constant 15 : i32
    %1 = vector.broadcast %c15_i32 : i32 to vector<1x256xi32>
    %2 = arith.andi %0, %1 : vector<1x256xi32>
    %c32_i32 = arith.constant 32 : i32
    %3 = vector.broadcast %c32_i32 : i32 to vector<1x256xi32>
    %4 = arith.cmpi sge, %0, %3 : vector<1x256xi32>
    %c288_i32 = arith.constant 288 : i32
    %5 = vector.broadcast %c288_i32 : i32 to vector<1x256xi32>
    %6 = arith.cmpi slt, %0, %5 : vector<1x256xi32>
    %7 = arith.andi %4, %6 : vector<1x256xi1>
    %c2_i32 = arith.constant 2 : i32
    %8 = vector.broadcast %c2_i32 : i32 to vector<1x256xi32>
    %9 = arith.cmpi sge, %2, %8 : vector<1x256xi32>
    %c18_i32 = arith.constant 18 : i32
    %10 = vector.broadcast %c18_i32 : i32 to vector<1x256xi32>
    %11 = arith.cmpi slt, %2, %10 : vector<1x256xi32>
    %12 = arith.andi %9, %11 : vector<1x256xi1>
    %c16_i32 = arith.constant 16 : i32
    %13 = vector.broadcast %c16_i32 : i32 to vector<1x256xi32>
    %14 = arith.cmpi sge, %0, %13 : vector<1x256xi32>
    %c272_i32 = arith.constant 272 : i32
    %15 = vector.broadcast %c272_i32 : i32 to vector<1x256xi32>
    %16 = arith.cmpi slt, %0, %15 : vector<1x256xi32>
    %17 = arith.andi %14, %16 : vector<1x256xi1>
    %c1_i32 = arith.constant 1 : i32
    %18 = vector.broadcast %c1_i32 : i32 to vector<1x256xi32>
    %19 = arith.cmpi sge, %2, %18 : vector<1x256xi32>
    %c17_i32 = arith.constant 17 : i32
    %20 = vector.broadcast %c17_i32 : i32 to vector<1x256xi32>
    %21 = arith.cmpi slt, %2, %20 : vector<1x256xi32>
    %22 = arith.andi %19, %21 : vector<1x256xi1>
    %c-16_i32 = arith.constant -16 : i32
    %23 = vector.broadcast %c-16_i32 : i32 to vector<1x256xi32>
    %24 = arith.cmpi sge, %0, %23 : vector<1x256xi32>
    %c240_i32 = arith.constant 240 : i32
    %25 = vector.broadcast %c240_i32 : i32 to vector<1x256xi32>
    %26 = arith.cmpi slt, %0, %25 : vector<1x256xi32>
    %27 = arith.andi %24, %26 : vector<1x256xi1>
    %c-1_i32 = arith.constant -1 : i32
    %28 = vector.broadcast %c-1_i32 : i32 to vector<1x256xi32>
    %29 = arith.cmpi sge, %2, %28 : vector<1x256xi32>
    %c15_i32_0 = arith.constant 15 : i32
    %30 = vector.broadcast %c15_i32_0 : i32 to vector<1x256xi32>
    %31 = arith.cmpi slt, %2, %30 : vector<1x256xi32>
    %32 = arith.andi %29, %31 : vector<1x256xi1>
    %c-32_i32 = arith.constant -32 : i32
    %33 = vector.broadcast %c-32_i32 : i32 to vector<1x256xi32>
    %34 = arith.cmpi sge, %0, %33 : vector<1x256xi32>
    %c224_i32 = arith.constant 224 : i32
    %35 = vector.broadcast %c224_i32 : i32 to vector<1x256xi32>
    %36 = arith.cmpi slt, %0, %35 : vector<1x256xi32>
    %37 = arith.andi %34, %36 : vector<1x256xi1>
    %c-2_i32 = arith.constant -2 : i32
    %38 = vector.broadcast %c-2_i32 : i32 to vector<1x256xi32>
    %39 = arith.cmpi sge, %2, %38 : vector<1x256xi32>
    %c14_i32 = arith.constant 14 : i32
    %40 = vector.broadcast %c14_i32 : i32 to vector<1x256xi32>
    %41 = arith.cmpi slt, %2, %40 : vector<1x256xi32>
    %42 = arith.andi %39, %41 : vector<1x256xi1>
    %c0 = arith.constant 0 : index
    %c0_1 = arith.constant 0 : index
    %c0_2 = arith.constant 0 : index
    %43 = vector.load %arg1[%c0, %c0_1, %c0_2] : memref<1x4x256xf32, #tpu.memory_space<vmem>>, vector<1x4x256xf32>
    %44 = vector.shape_cast %43 : vector<1x4x256xf32> to vector<4x256xf32>
    %c0_3 = arith.constant 0 : index
    %c0_4 = arith.constant 0 : index
    %45 = vector.load %arg2[%c0_3, %c0_4] : memref<4x2xf32, #tpu.memory_space<vmem>>, vector<4x1xf32>
    %46 = vector.broadcast %45 : vector<4x1xf32> to vector<4x256xf32>
    %47 = arith.mulf %46, %44 : vector<4x256xf32>
    %c0_5 = arith.constant 0 : index
    %c1 = arith.constant 1 : index
    %48 = vector.load %arg2[%c0_5, %c1] : memref<4x2xf32, #tpu.memory_space<vmem>>, vector<4x1xf32>
    %49 = vector.broadcast %48 : vector<4x1xf32> to vector<4x256xf32>
    %50 = arith.mulf %49, %44 : vector<4x256xf32>
    %cst = arith.constant dense<0.000000e+00> : vector<256xf32>
    %51 = vector.multi_reduction <add>, %47, %cst [0] : vector<4x256xf32> to vector<256xf32>
    %52 = vector.shape_cast %51 : vector<256xf32> to vector<1x256xf32>
    %c0_6 = arith.constant 0 : index
    %53 = memref.load %arg3[%c0_6] : memref<2xf32, #tpu.memory_space<smem>>
    %54 = vector.broadcast %53 : f32 to vector<1x256xf32>
    %55 = arith.addf %52, %54 : vector<1x256xf32>
    %cst_7 = arith.constant 0.000000e+00 : f32
    %56 = vector.broadcast %cst_7 : f32 to vector<1x256xf32>
    %57 = arith.maximumf %55, %56 : vector<1x256xf32>
    %cst_8 = arith.constant dense<0.000000e+00> : vector<256xf32>
    %58 = vector.multi_reduction <add>, %50, %cst_8 [0] : vector<4x256xf32> to vector<256xf32>
    %59 = vector.shape_cast %58 : vector<256xf32> to vector<1x256xf32>
    %c1_9 = arith.constant 1 : index
    %60 = memref.load %arg3[%c1_9] : memref<2xf32, #tpu.memory_space<smem>>
    %61 = vector.broadcast %60 : f32 to vector<1x256xf32>
    %62 = arith.addf %59, %61 : vector<1x256xf32>
    %cst_10 = arith.constant 0.000000e+00 : f32
    %63 = vector.broadcast %cst_10 : f32 to vector<1x256xf32>
    %64 = arith.maximumf %62, %63 : vector<1x256xf32>
    %65 = tpu.concatenate %44, %57, %64 in 0 : vector<4x256xf32>, vector<1x256xf32>, vector<1x256xf32> -> vector<6x256xf32>
    %c17_i32_11 = arith.constant 17 : i32
    %66 = tpu.dynamic_rotate %65 by %c17_i32_11 dim 1 : vector<6x256xf32>, i32 -> vector<6x256xf32>
    %67 = arith.andi %17, %22 : vector<1x256xi1>
    %cst_12 = arith.constant 0.000000e+00 : f32
    %68 = vector.shape_cast %67 : vector<1x256xi1> to vector<1x256xi1>
    %69 = vector.broadcast %68 : vector<1x256xi1> to vector<6x256xi1>
    %70 = vector.broadcast %cst_12 : f32 to vector<6x256xf32>
    %71 = arith.select %69, %66, %70 : vector<6x256xi1>, vector<6x256xf32>
    %c0_13 = arith.constant 0 : index
    %c0_14 = arith.constant 0 : index
    %72 = vector.load %arg4[%c0_13, %c0_14] : memref<6x18xf32, #tpu.memory_space<vmem>>, vector<6x1xf32>
    %73 = vector.broadcast %72 : vector<6x1xf32> to vector<6x256xf32>
    %74 = arith.mulf %73, %71 : vector<6x256xf32>
    %c0_15 = arith.constant 0 : index
    %c9 = arith.constant 9 : index
    %75 = vector.load %arg4[%c0_15, %c9] : memref<6x18xf32, #tpu.memory_space<vmem>>, vector<6x1xf32>
    %76 = vector.broadcast %75 : vector<6x1xf32> to vector<6x256xf32>
    %77 = arith.mulf %76, %71 : vector<6x256xf32>
    %c16_i32_16 = arith.constant 16 : i32
    %78 = tpu.dynamic_rotate %65 by %c16_i32_16 dim 1 : vector<6x256xf32>, i32 -> vector<6x256xf32>
    %cst_17 = arith.constant 0.000000e+00 : f32
    %79 = vector.shape_cast %17 : vector<1x256xi1> to vector<1x256xi1>
    %80 = vector.broadcast %79 : vector<1x256xi1> to vector<6x256xi1>
    %81 = vector.broadcast %cst_17 : f32 to vector<6x256xf32>
    %82 = arith.select %80, %78, %81 : vector<6x256xi1>, vector<6x256xf32>
    %c0_18 = arith.constant 0 : index
    %c1_19 = arith.constant 1 : index
    %83 = vector.load %arg4[%c0_18, %c1_19] : memref<6x18xf32, #tpu.memory_space<vmem>>, vector<6x1xf32>
    %84 = vector.broadcast %83 : vector<6x1xf32> to vector<6x256xf32>
    %85 = arith.mulf %84, %82 : vector<6x256xf32>
    %c0_20 = arith.constant 0 : index
    %c10 = arith.constant 10 : index
    %86 = vector.load %arg4[%c0_20, %c10] : memref<6x18xf32, #tpu.memory_space<vmem>>, vector<6x1xf32>
    %87 = vector.broadcast %86 : vector<6x1xf32> to vector<6x256xf32>
    %88 = arith.mulf %87, %82 : vector<6x256xf32>
    %c15_i32_21 = arith.constant 15 : i32
    %89 = tpu.dynamic_rotate %65 by %c15_i32_21 dim 1 : vector<6x256xf32>, i32 -> vector<6x256xf32>
    %90 = arith.andi %17, %32 : vector<1x256xi1>
    %cst_22 = arith.constant 0.000000e+00 : f32
    %91 = vector.shape_cast %90 : vector<1x256xi1> to vector<1x256xi1>
    %92 = vector.broadcast %91 : vector<1x256xi1> to vector<6x256xi1>
    %93 = vector.broadcast %cst_22 : f32 to vector<6x256xf32>
    %94 = arith.select %92, %89, %93 : vector<6x256xi1>, vector<6x256xf32>
    %c0_23 = arith.constant 0 : index
    %c2 = arith.constant 2 : index
    %95 = vector.load %arg4[%c0_23, %c2] : memref<6x18xf32, #tpu.memory_space<vmem>>, vector<6x1xf32>
    %96 = vector.broadcast %95 : vector<6x1xf32> to vector<6x256xf32>
    %97 = arith.mulf %96, %94 : vector<6x256xf32>
    %98 = arith.addf %74, %97 : vector<6x256xf32>
    %c0_24 = arith.constant 0 : index
    %c11 = arith.constant 11 : index
    %99 = vector.load %arg4[%c0_24, %c11] : memref<6x18xf32, #tpu.memory_space<vmem>>, vector<6x1xf32>
    %100 = vector.broadcast %99 : vector<6x1xf32> to vector<6x256xf32>
    %101 = arith.mulf %100, %94 : vector<6x256xf32>
    %102 = arith.addf %77, %101 : vector<6x256xf32>
    %c1_i32_25 = arith.constant 1 : i32
    %103 = tpu.dynamic_rotate %65 by %c1_i32_25 dim 1 : vector<6x256xf32>, i32 -> vector<6x256xf32>
    %cst_26 = arith.constant 0.000000e+00 : f32
    %104 = vector.shape_cast %22 : vector<1x256xi1> to vector<1x256xi1>
    %105 = vector.broadcast %104 : vector<1x256xi1> to vector<6x256xi1>
    %106 = vector.broadcast %cst_26 : f32 to vector<6x256xf32>
    %107 = arith.select %105, %103, %106 : vector<6x256xi1>, vector<6x256xf32>
    %c0_27 = arith.constant 0 : index
    %c3 = arith.constant 3 : index
    %108 = vector.load %arg4[%c0_27, %c3] : memref<6x18xf32, #tpu.memory_space<vmem>>, vector<6x1xf32>
    %109 = vector.broadcast %108 : vector<6x1xf32> to vector<6x256xf32>
    %110 = arith.mulf %109, %107 : vector<6x256xf32>
    %111 = arith.addf %85, %110 : vector<6x256xf32>
    %c0_28 = arith.constant 0 : index
    %c12 = arith.constant 12 : index
    %112 = vector.load %arg4[%c0_28, %c12] : memref<6x18xf32, #tpu.memory_space<vmem>>, vector<6x1xf32>
    %113 = vector.broadcast %112 : vector<6x1xf32> to vector<6x256xf32>
    %114 = arith.mulf %113, %107 : vector<6x256xf32>
    %115 = arith.addf %88, %114 : vector<6x256xf32>
    %c0_29 = arith.constant 0 : index
    %c4 = arith.constant 4 : index
    %116 = vector.load %arg4[%c0_29, %c4] : memref<6x18xf32, #tpu.memory_space<vmem>>, vector<6x1xf32>
    %117 = vector.broadcast %116 : vector<6x1xf32> to vector<6x256xf32>
    %118 = arith.mulf %117, %65 : vector<6x256xf32>
    %119 = arith.addf %98, %118 : vector<6x256xf32>
    %c0_30 = arith.constant 0 : index
    %c13 = arith.constant 13 : index
    %120 = vector.load %arg4[%c0_30, %c13] : memref<6x18xf32, #tpu.memory_space<vmem>>, vector<6x1xf32>
    %121 = vector.broadcast %120 : vector<6x1xf32> to vector<6x256xf32>
    %122 = arith.mulf %121, %65 : vector<6x256xf32>
    %123 = arith.addf %102, %122 : vector<6x256xf32>
    %c255_i32 = arith.constant 255 : i32
    %124 = tpu.dynamic_rotate %65 by %c255_i32 dim 1 : vector<6x256xf32>, i32 -> vector<6x256xf32>
    %cst_31 = arith.constant 0.000000e+00 : f32
    %125 = vector.shape_cast %32 : vector<1x256xi1> to vector<1x256xi1>
    %126 = vector.broadcast %125 : vector<1x256xi1> to vector<6x256xi1>
    %127 = vector.broadcast %cst_31 : f32 to vector<6x256xf32>
    %128 = arith.select %126, %124, %127 : vector<6x256xi1>, vector<6x256xf32>
    %c0_32 = arith.constant 0 : index
    %c5 = arith.constant 5 : index
    %129 = vector.load %arg4[%c0_32, %c5] : memref<6x18xf32, #tpu.memory_space<vmem>>, vector<6x1xf32>
    %130 = vector.broadcast %129 : vector<6x1xf32> to vector<6x256xf32>
    %131 = arith.mulf %130, %128 : vector<6x256xf32>
    %132 = arith.addf %111, %131 : vector<6x256xf32>
    %c0_33 = arith.constant 0 : index
    %c14 = arith.constant 14 : index
    %133 = vector.load %arg4[%c0_33, %c14] : memref<6x18xf32, #tpu.memory_space<vmem>>, vector<6x1xf32>
    %134 = vector.broadcast %133 : vector<6x1xf32> to vector<6x256xf32>
    %135 = arith.mulf %134, %128 : vector<6x256xf32>
    %136 = arith.addf %115, %135 : vector<6x256xf32>
    %c241_i32 = arith.constant 241 : i32
    %137 = tpu.dynamic_rotate %65 by %c241_i32 dim 1 : vector<6x256xf32>, i32 -> vector<6x256xf32>
    %138 = arith.andi %27, %22 : vector<1x256xi1>
    %cst_34 = arith.constant 0.000000e+00 : f32
    %139 = vector.shape_cast %138 : vector<1x256xi1> to vector<1x256xi1>
    %140 = vector.broadcast %139 : vector<1x256xi1> to vector<6x256xi1>
    %141 = vector.broadcast %cst_34 : f32 to vector<6x256xf32>
    %142 = arith.select %140, %137, %141 : vector<6x256xi1>, vector<6x256xf32>
    %c0_35 = arith.constant 0 : index
    %c6 = arith.constant 6 : index
    %143 = vector.load %arg4[%c0_35, %c6] : memref<6x18xf32, #tpu.memory_space<vmem>>, vector<6x1xf32>
    %144 = vector.broadcast %143 : vector<6x1xf32> to vector<6x256xf32>
    %145 = arith.mulf %144, %142 : vector<6x256xf32>
    %146 = arith.addf %119, %145 : vector<6x256xf32>
    %c0_36 = arith.constant 0 : index
    %c15 = arith.constant 15 : index
    %147 = vector.load %arg4[%c0_36, %c15] : memref<6x18xf32, #tpu.memory_space<vmem>>, vector<6x1xf32>
    %148 = vector.broadcast %147 : vector<6x1xf32> to vector<6x256xf32>
    %149 = arith.mulf %148, %142 : vector<6x256xf32>
    %150 = arith.addf %123, %149 : vector<6x256xf32>
    %c240_i32_37 = arith.constant 240 : i32
    %151 = tpu.dynamic_rotate %65 by %c240_i32_37 dim 1 : vector<6x256xf32>, i32 -> vector<6x256xf32>
    %cst_38 = arith.constant 0.000000e+00 : f32
    %152 = vector.shape_cast %27 : vector<1x256xi1> to vector<1x256xi1>
    %153 = vector.broadcast %152 : vector<1x256xi1> to vector<6x256xi1>
    %154 = vector.broadcast %cst_38 : f32 to vector<6x256xf32>
    %155 = arith.select %153, %151, %154 : vector<6x256xi1>, vector<6x256xf32>
    %c0_39 = arith.constant 0 : index
    %c7 = arith.constant 7 : index
    %156 = vector.load %arg4[%c0_39, %c7] : memref<6x18xf32, #tpu.memory_space<vmem>>, vector<6x1xf32>
    %157 = vector.broadcast %156 : vector<6x1xf32> to vector<6x256xf32>
    %158 = arith.mulf %157, %155 : vector<6x256xf32>
    %159 = arith.addf %132, %158 : vector<6x256xf32>
    %c0_40 = arith.constant 0 : index
    %c16 = arith.constant 16 : index
    %160 = vector.load %arg4[%c0_40, %c16] : memref<6x18xf32, #tpu.memory_space<vmem>>, vector<6x1xf32>
    %161 = vector.broadcast %160 : vector<6x1xf32> to vector<6x256xf32>
    %162 = arith.mulf %161, %155 : vector<6x256xf32>
    %163 = arith.addf %136, %162 : vector<6x256xf32>
    %c239_i32 = arith.constant 239 : i32
    %164 = tpu.dynamic_rotate %65 by %c239_i32 dim 1 : vector<6x256xf32>, i32 -> vector<6x256xf32>
    %165 = arith.andi %27, %32 : vector<1x256xi1>
    %cst_41 = arith.constant 0.000000e+00 : f32
    %166 = vector.shape_cast %165 : vector<1x256xi1> to vector<1x256xi1>
    %167 = vector.broadcast %166 : vector<1x256xi1> to vector<6x256xi1>
    %168 = vector.broadcast %cst_41 : f32 to vector<6x256xf32>
    %169 = arith.select %167, %164, %168 : vector<6x256xi1>, vector<6x256xf32>
    %c0_42 = arith.constant 0 : index
    %c8 = arith.constant 8 : index
    %170 = vector.load %arg4[%c0_42, %c8] : memref<6x18xf32, #tpu.memory_space<vmem>>, vector<6x1xf32>
    %171 = vector.broadcast %170 : vector<6x1xf32> to vector<6x256xf32>
    %172 = arith.mulf %171, %169 : vector<6x256xf32>
    %173 = arith.addf %146, %172 : vector<6x256xf32>
    %c0_43 = arith.constant 0 : index
    %c17 = arith.constant 17 : index
    %174 = vector.load %arg4[%c0_43, %c17] : memref<6x18xf32, #tpu.memory_space<vmem>>, vector<6x1xf32>
    %175 = vector.broadcast %174 : vector<6x1xf32> to vector<6x256xf32>
    %176 = arith.mulf %175, %169 : vector<6x256xf32>
    %177 = arith.addf %150, %176 : vector<6x256xf32>
    %178 = arith.addf %173, %159 : vector<6x256xf32>
    %cst_44 = arith.constant dense<0.000000e+00> : vector<256xf32>
    %179 = vector.multi_reduction <add>, %178, %cst_44 [0] : vector<6x256xf32> to vector<256xf32>
    %180 = vector.shape_cast %179 : vector<256xf32> to vector<1x256xf32>
    %c0_45 = arith.constant 0 : index
    %181 = memref.load %arg5[%c0_45] : memref<2xf32, #tpu.memory_space<smem>>
    %182 = vector.broadcast %181 : f32 to vector<1x256xf32>
    %183 = arith.addf %180, %182 : vector<1x256xf32>
    %cst_46 = arith.constant 0.000000e+00 : f32
    %184 = vector.broadcast %cst_46 : f32 to vector<1x256xf32>
    %185 = arith.maximumf %183, %184 : vector<1x256xf32>
    %186 = arith.addf %177, %163 : vector<6x256xf32>
    %cst_47 = arith.constant dense<0.000000e+00> : vector<256xf32>
    %187 = vector.multi_reduction <add>, %186, %cst_47 [0] : vector<6x256xf32> to vector<256xf32>
    %188 = vector.shape_cast %187 : vector<256xf32> to vector<1x256xf32>
    %c1_48 = arith.constant 1 : index
    %189 = memref.load %arg5[%c1_48] : memref<2xf32, #tpu.memory_space<smem>>
    %190 = vector.broadcast %189 : f32 to vector<1x256xf32>
    %191 = arith.addf %188, %190 : vector<1x256xf32>
    %cst_49 = arith.constant 0.000000e+00 : f32
    %192 = vector.broadcast %cst_49 : f32 to vector<1x256xf32>
    %193 = arith.maximumf %191, %192 : vector<1x256xf32>
    %194 = tpu.concatenate %65, %185, %193 in 0 : vector<6x256xf32>, vector<1x256xf32>, vector<1x256xf32> -> vector<8x256xf32>
    %c34_i32 = arith.constant 34 : i32
    %195 = tpu.dynamic_rotate %194 by %c34_i32 dim 1 : vector<8x256xf32>, i32 -> vector<8x256xf32>
    %196 = arith.andi %7, %12 : vector<1x256xi1>
    %cst_50 = arith.constant 0.000000e+00 : f32
    %197 = vector.shape_cast %196 : vector<1x256xi1> to vector<1x256xi1>
    %198 = vector.broadcast %197 : vector<1x256xi1> to vector<8x256xi1>
    %199 = vector.broadcast %cst_50 : f32 to vector<8x256xf32>
    %200 = arith.select %198, %195, %199 : vector<8x256xi1>, vector<8x256xf32>
    %c0_51 = arith.constant 0 : index
    %c0_52 = arith.constant 0 : index
    %201 = vector.load %arg6[%c0_51, %c0_52] : memref<8x50xf32, #tpu.memory_space<vmem>>, vector<8x1xf32>
    %202 = vector.broadcast %201 : vector<8x1xf32> to vector<8x256xf32>
    %203 = arith.mulf %202, %200 : vector<8x256xf32>
    %c0_53 = arith.constant 0 : index
    %c25 = arith.constant 25 : index
    %204 = vector.load %arg6[%c0_53, %c25] : memref<8x50xf32, #tpu.memory_space<vmem>>, vector<8x1xf32>
    %205 = vector.broadcast %204 : vector<8x1xf32> to vector<8x256xf32>
    %206 = arith.mulf %205, %200 : vector<8x256xf32>
    %c33_i32 = arith.constant 33 : i32
    %207 = tpu.dynamic_rotate %194 by %c33_i32 dim 1 : vector<8x256xf32>, i32 -> vector<8x256xf32>
    %208 = arith.andi %7, %22 : vector<1x256xi1>
    %cst_54 = arith.constant 0.000000e+00 : f32
    %209 = vector.shape_cast %208 : vector<1x256xi1> to vector<1x256xi1>
    %210 = vector.broadcast %209 : vector<1x256xi1> to vector<8x256xi1>
    %211 = vector.broadcast %cst_54 : f32 to vector<8x256xf32>
    %212 = arith.select %210, %207, %211 : vector<8x256xi1>, vector<8x256xf32>
    %c0_55 = arith.constant 0 : index
    %c1_56 = arith.constant 1 : index
    %213 = vector.load %arg6[%c0_55, %c1_56] : memref<8x50xf32, #tpu.memory_space<vmem>>, vector<8x1xf32>
    %214 = vector.broadcast %213 : vector<8x1xf32> to vector<8x256xf32>
    %215 = arith.mulf %214, %212 : vector<8x256xf32>
    %c0_57 = arith.constant 0 : index
    %c26 = arith.constant 26 : index
    %216 = vector.load %arg6[%c0_57, %c26] : memref<8x50xf32, #tpu.memory_space<vmem>>, vector<8x1xf32>
    %217 = vector.broadcast %216 : vector<8x1xf32> to vector<8x256xf32>
    %218 = arith.mulf %217, %212 : vector<8x256xf32>
    %c32_i32_58 = arith.constant 32 : i32
    %219 = tpu.dynamic_rotate %194 by %c32_i32_58 dim 1 : vector<8x256xf32>, i32 -> vector<8x256xf32>
    %cst_59 = arith.constant 0.000000e+00 : f32
    %220 = vector.shape_cast %7 : vector<1x256xi1> to vector<1x256xi1>
    %221 = vector.broadcast %220 : vector<1x256xi1> to vector<8x256xi1>
    %222 = vector.broadcast %cst_59 : f32 to vector<8x256xf32>
    %223 = arith.select %221, %219, %222 : vector<8x256xi1>, vector<8x256xf32>
    %c0_60 = arith.constant 0 : index
    %c2_61 = arith.constant 2 : index
    %224 = vector.load %arg6[%c0_60, %c2_61] : memref<8x50xf32, #tpu.memory_space<vmem>>, vector<8x1xf32>
    %225 = vector.broadcast %224 : vector<8x1xf32> to vector<8x256xf32>
    %226 = arith.mulf %225, %223 : vector<8x256xf32>
    %227 = arith.addf %203, %226 : vector<8x256xf32>
    %c0_62 = arith.constant 0 : index
    %c27 = arith.constant 27 : index
    %228 = vector.load %arg6[%c0_62, %c27] : memref<8x50xf32, #tpu.memory_space<vmem>>, vector<8x1xf32>
    %229 = vector.broadcast %228 : vector<8x1xf32> to vector<8x256xf32>
    %230 = arith.mulf %229, %223 : vector<8x256xf32>
    %231 = arith.addf %206, %230 : vector<8x256xf32>
    %c31_i32 = arith.constant 31 : i32
    %232 = tpu.dynamic_rotate %194 by %c31_i32 dim 1 : vector<8x256xf32>, i32 -> vector<8x256xf32>
    %233 = arith.andi %7, %32 : vector<1x256xi1>
    %cst_63 = arith.constant 0.000000e+00 : f32
    %234 = vector.shape_cast %233 : vector<1x256xi1> to vector<1x256xi1>
    %235 = vector.broadcast %234 : vector<1x256xi1> to vector<8x256xi1>
    %236 = vector.broadcast %cst_63 : f32 to vector<8x256xf32>
    %237 = arith.select %235, %232, %236 : vector<8x256xi1>, vector<8x256xf32>
    %c0_64 = arith.constant 0 : index
    %c3_65 = arith.constant 3 : index
    %238 = vector.load %arg6[%c0_64, %c3_65] : memref<8x50xf32, #tpu.memory_space<vmem>>, vector<8x1xf32>
    %239 = vector.broadcast %238 : vector<8x1xf32> to vector<8x256xf32>
    %240 = arith.mulf %239, %237 : vector<8x256xf32>
    %241 = arith.addf %215, %240 : vector<8x256xf32>
    %c0_66 = arith.constant 0 : index
    %c28 = arith.constant 28 : index
    %242 = vector.load %arg6[%c0_66, %c28] : memref<8x50xf32, #tpu.memory_space<vmem>>, vector<8x1xf32>
    %243 = vector.broadcast %242 : vector<8x1xf32> to vector<8x256xf32>
    %244 = arith.mulf %243, %237 : vector<8x256xf32>
    %245 = arith.addf %218, %244 : vector<8x256xf32>
    %c30_i32 = arith.constant 30 : i32
    %246 = tpu.dynamic_rotate %194 by %c30_i32 dim 1 : vector<8x256xf32>, i32 -> vector<8x256xf32>
    %247 = arith.andi %7, %42 : vector<1x256xi1>
    %cst_67 = arith.constant 0.000000e+00 : f32
    %248 = vector.shape_cast %247 : vector<1x256xi1> to vector<1x256xi1>
    %249 = vector.broadcast %248 : vector<1x256xi1> to vector<8x256xi1>
    %250 = vector.broadcast %cst_67 : f32 to vector<8x256xf32>
    %251 = arith.select %249, %246, %250 : vector<8x256xi1>, vector<8x256xf32>
    %c0_68 = arith.constant 0 : index
    %c4_69 = arith.constant 4 : index
    %252 = vector.load %arg6[%c0_68, %c4_69] : memref<8x50xf32, #tpu.memory_space<vmem>>, vector<8x1xf32>
    %253 = vector.broadcast %252 : vector<8x1xf32> to vector<8x256xf32>
    %254 = arith.mulf %253, %251 : vector<8x256xf32>
    %255 = arith.addf %227, %254 : vector<8x256xf32>
    %c0_70 = arith.constant 0 : index
    %c29 = arith.constant 29 : index
    %256 = vector.load %arg6[%c0_70, %c29] : memref<8x50xf32, #tpu.memory_space<vmem>>, vector<8x1xf32>
    %257 = vector.broadcast %256 : vector<8x1xf32> to vector<8x256xf32>
    %258 = arith.mulf %257, %251 : vector<8x256xf32>
    %259 = arith.addf %231, %258 : vector<8x256xf32>
    %c18_i32_71 = arith.constant 18 : i32
    %260 = tpu.dynamic_rotate %194 by %c18_i32_71 dim 1 : vector<8x256xf32>, i32 -> vector<8x256xf32>
    %261 = arith.andi %17, %12 : vector<1x256xi1>
    %cst_72 = arith.constant 0.000000e+00 : f32
    %262 = vector.shape_cast %261 : vector<1x256xi1> to vector<1x256xi1>
    %263 = vector.broadcast %262 : vector<1x256xi1> to vector<8x256xi1>
    %264 = vector.broadcast %cst_72 : f32 to vector<8x256xf32>
    %265 = arith.select %263, %260, %264 : vector<8x256xi1>, vector<8x256xf32>
    %c0_73 = arith.constant 0 : index
    %c5_74 = arith.constant 5 : index
    %266 = vector.load %arg6[%c0_73, %c5_74] : memref<8x50xf32, #tpu.memory_space<vmem>>, vector<8x1xf32>
    %267 = vector.broadcast %266 : vector<8x1xf32> to vector<8x256xf32>
    %268 = arith.mulf %267, %265 : vector<8x256xf32>
    %269 = arith.addf %241, %268 : vector<8x256xf32>
    %c0_75 = arith.constant 0 : index
    %c30 = arith.constant 30 : index
    %270 = vector.load %arg6[%c0_75, %c30] : memref<8x50xf32, #tpu.memory_space<vmem>>, vector<8x1xf32>
    %271 = vector.broadcast %270 : vector<8x1xf32> to vector<8x256xf32>
    %272 = arith.mulf %271, %265 : vector<8x256xf32>
    %273 = arith.addf %245, %272 : vector<8x256xf32>
    %c17_i32_76 = arith.constant 17 : i32
    %274 = tpu.dynamic_rotate %194 by %c17_i32_76 dim 1 : vector<8x256xf32>, i32 -> vector<8x256xf32>
    %275 = arith.andi %17, %22 : vector<1x256xi1>
    %cst_77 = arith.constant 0.000000e+00 : f32
    %276 = vector.shape_cast %275 : vector<1x256xi1> to vector<1x256xi1>
    %277 = vector.broadcast %276 : vector<1x256xi1> to vector<8x256xi1>
    %278 = vector.broadcast %cst_77 : f32 to vector<8x256xf32>
    %279 = arith.select %277, %274, %278 : vector<8x256xi1>, vector<8x256xf32>
    %c0_78 = arith.constant 0 : index
    %c6_79 = arith.constant 6 : index
    %280 = vector.load %arg6[%c0_78, %c6_79] : memref<8x50xf32, #tpu.memory_space<vmem>>, vector<8x1xf32>
    %281 = vector.broadcast %280 : vector<8x1xf32> to vector<8x256xf32>
    %282 = arith.mulf %281, %279 : vector<8x256xf32>
    %283 = arith.addf %255, %282 : vector<8x256xf32>
    %c0_80 = arith.constant 0 : index
    %c31 = arith.constant 31 : index
    %284 = vector.load %arg6[%c0_80, %c31] : memref<8x50xf32, #tpu.memory_space<vmem>>, vector<8x1xf32>
    %285 = vector.broadcast %284 : vector<8x1xf32> to vector<8x256xf32>
    %286 = arith.mulf %285, %279 : vector<8x256xf32>
    %287 = arith.addf %259, %286 : vector<8x256xf32>
    %c16_i32_81 = arith.constant 16 : i32
    %288 = tpu.dynamic_rotate %194 by %c16_i32_81 dim 1 : vector<8x256xf32>, i32 -> vector<8x256xf32>
    %cst_82 = arith.constant 0.000000e+00 : f32
    %289 = vector.shape_cast %17 : vector<1x256xi1> to vector<1x256xi1>
    %290 = vector.broadcast %289 : vector<1x256xi1> to vector<8x256xi1>
    %291 = vector.broadcast %cst_82 : f32 to vector<8x256xf32>
    %292 = arith.select %290, %288, %291 : vector<8x256xi1>, vector<8x256xf32>
    %c0_83 = arith.constant 0 : index
    %c7_84 = arith.constant 7 : index
    %293 = vector.load %arg6[%c0_83, %c7_84] : memref<8x50xf32, #tpu.memory_space<vmem>>, vector<8x1xf32>
    %294 = vector.broadcast %293 : vector<8x1xf32> to vector<8x256xf32>
    %295 = arith.mulf %294, %292 : vector<8x256xf32>
    %296 = arith.addf %269, %295 : vector<8x256xf32>
    %c0_85 = arith.constant 0 : index
    %c32 = arith.constant 32 : index
    %297 = vector.load %arg6[%c0_85, %c32] : memref<8x50xf32, #tpu.memory_space<vmem>>, vector<8x1xf32>
    %298 = vector.broadcast %297 : vector<8x1xf32> to vector<8x256xf32>
    %299 = arith.mulf %298, %292 : vector<8x256xf32>
    %300 = arith.addf %273, %299 : vector<8x256xf32>
    %c15_i32_86 = arith.constant 15 : i32
    %301 = tpu.dynamic_rotate %194 by %c15_i32_86 dim 1 : vector<8x256xf32>, i32 -> vector<8x256xf32>
    %302 = arith.andi %17, %32 : vector<1x256xi1>
    %cst_87 = arith.constant 0.000000e+00 : f32
    %303 = vector.shape_cast %302 : vector<1x256xi1> to vector<1x256xi1>
    %304 = vector.broadcast %303 : vector<1x256xi1> to vector<8x256xi1>
    %305 = vector.broadcast %cst_87 : f32 to vector<8x256xf32>
    %306 = arith.select %304, %301, %305 : vector<8x256xi1>, vector<8x256xf32>
    %c0_88 = arith.constant 0 : index
    %c8_89 = arith.constant 8 : index
    %307 = vector.load %arg6[%c0_88, %c8_89] : memref<8x50xf32, #tpu.memory_space<vmem>>, vector<8x1xf32>
    %308 = vector.broadcast %307 : vector<8x1xf32> to vector<8x256xf32>
    %309 = arith.mulf %308, %306 : vector<8x256xf32>
    %310 = arith.addf %283, %309 : vector<8x256xf32>
    %c0_90 = arith.constant 0 : index
    %c33 = arith.constant 33 : index
    %311 = vector.load %arg6[%c0_90, %c33] : memref<8x50xf32, #tpu.memory_space<vmem>>, vector<8x1xf32>
    %312 = vector.broadcast %311 : vector<8x1xf32> to vector<8x256xf32>
    %313 = arith.mulf %312, %306 : vector<8x256xf32>
    %314 = arith.addf %287, %313 : vector<8x256xf32>
    %c14_i32_91 = arith.constant 14 : i32
    %315 = tpu.dynamic_rotate %194 by %c14_i32_91 dim 1 : vector<8x256xf32>, i32 -> vector<8x256xf32>
    %316 = arith.andi %17, %42 : vector<1x256xi1>
    %cst_92 = arith.constant 0.000000e+00 : f32
    %317 = vector.shape_cast %316 : vector<1x256xi1> to vector<1x256xi1>
    %318 = vector.broadcast %317 : vector<1x256xi1> to vector<8x256xi1>
    %319 = vector.broadcast %cst_92 : f32 to vector<8x256xf32>
    %320 = arith.select %318, %315, %319 : vector<8x256xi1>, vector<8x256xf32>
    %c0_93 = arith.constant 0 : index
    %c9_94 = arith.constant 9 : index
    %321 = vector.load %arg6[%c0_93, %c9_94] : memref<8x50xf32, #tpu.memory_space<vmem>>, vector<8x1xf32>
    %322 = vector.broadcast %321 : vector<8x1xf32> to vector<8x256xf32>
    %323 = arith.mulf %322, %320 : vector<8x256xf32>
    %324 = arith.addf %296, %323 : vector<8x256xf32>
    %c0_95 = arith.constant 0 : index
    %c34 = arith.constant 34 : index
    %325 = vector.load %arg6[%c0_95, %c34] : memref<8x50xf32, #tpu.memory_space<vmem>>, vector<8x1xf32>
    %326 = vector.broadcast %325 : vector<8x1xf32> to vector<8x256xf32>
    %327 = arith.mulf %326, %320 : vector<8x256xf32>
    %328 = arith.addf %300, %327 : vector<8x256xf32>
    %c2_i32_96 = arith.constant 2 : i32
    %329 = tpu.dynamic_rotate %194 by %c2_i32_96 dim 1 : vector<8x256xf32>, i32 -> vector<8x256xf32>
    %cst_97 = arith.constant 0.000000e+00 : f32
    %330 = vector.shape_cast %12 : vector<1x256xi1> to vector<1x256xi1>
    %331 = vector.broadcast %330 : vector<1x256xi1> to vector<8x256xi1>
    %332 = vector.broadcast %cst_97 : f32 to vector<8x256xf32>
    %333 = arith.select %331, %329, %332 : vector<8x256xi1>, vector<8x256xf32>
    %c0_98 = arith.constant 0 : index
    %c10_99 = arith.constant 10 : index
    %334 = vector.load %arg6[%c0_98, %c10_99] : memref<8x50xf32, #tpu.memory_space<vmem>>, vector<8x1xf32>
    %335 = vector.broadcast %334 : vector<8x1xf32> to vector<8x256xf32>
    %336 = arith.mulf %335, %333 : vector<8x256xf32>
    %337 = arith.addf %310, %336 : vector<8x256xf32>
    %c0_100 = arith.constant 0 : index
    %c35 = arith.constant 35 : index
    %338 = vector.load %arg6[%c0_100, %c35] : memref<8x50xf32, #tpu.memory_space<vmem>>, vector<8x1xf32>
    %339 = vector.broadcast %338 : vector<8x1xf32> to vector<8x256xf32>
    %340 = arith.mulf %339, %333 : vector<8x256xf32>
    %341 = arith.addf %314, %340 : vector<8x256xf32>
    %c1_i32_101 = arith.constant 1 : i32
    %342 = tpu.dynamic_rotate %194 by %c1_i32_101 dim 1 : vector<8x256xf32>, i32 -> vector<8x256xf32>
    %cst_102 = arith.constant 0.000000e+00 : f32
    %343 = vector.shape_cast %22 : vector<1x256xi1> to vector<1x256xi1>
    %344 = vector.broadcast %343 : vector<1x256xi1> to vector<8x256xi1>
    %345 = vector.broadcast %cst_102 : f32 to vector<8x256xf32>
    %346 = arith.select %344, %342, %345 : vector<8x256xi1>, vector<8x256xf32>
    %c0_103 = arith.constant 0 : index
    %c11_104 = arith.constant 11 : index
    %347 = vector.load %arg6[%c0_103, %c11_104] : memref<8x50xf32, #tpu.memory_space<vmem>>, vector<8x1xf32>
    %348 = vector.broadcast %347 : vector<8x1xf32> to vector<8x256xf32>
    %349 = arith.mulf %348, %346 : vector<8x256xf32>
    %350 = arith.addf %324, %349 : vector<8x256xf32>
    %c0_105 = arith.constant 0 : index
    %c36 = arith.constant 36 : index
    %351 = vector.load %arg6[%c0_105, %c36] : memref<8x50xf32, #tpu.memory_space<vmem>>, vector<8x1xf32>
    %352 = vector.broadcast %351 : vector<8x1xf32> to vector<8x256xf32>
    %353 = arith.mulf %352, %346 : vector<8x256xf32>
    %354 = arith.addf %328, %353 : vector<8x256xf32>
    %c0_106 = arith.constant 0 : index
    %c12_107 = arith.constant 12 : index
    %355 = vector.load %arg6[%c0_106, %c12_107] : memref<8x50xf32, #tpu.memory_space<vmem>>, vector<8x1xf32>
    %356 = vector.broadcast %355 : vector<8x1xf32> to vector<8x256xf32>
    %357 = arith.mulf %356, %194 : vector<8x256xf32>
    %358 = arith.addf %337, %357 : vector<8x256xf32>
    %c0_108 = arith.constant 0 : index
    %c37 = arith.constant 37 : index
    %359 = vector.load %arg6[%c0_108, %c37] : memref<8x50xf32, #tpu.memory_space<vmem>>, vector<8x1xf32>
    %360 = vector.broadcast %359 : vector<8x1xf32> to vector<8x256xf32>
    %361 = arith.mulf %360, %194 : vector<8x256xf32>
    %362 = arith.addf %341, %361 : vector<8x256xf32>
    %c255_i32_109 = arith.constant 255 : i32
    %363 = tpu.dynamic_rotate %194 by %c255_i32_109 dim 1 : vector<8x256xf32>, i32 -> vector<8x256xf32>
    %cst_110 = arith.constant 0.000000e+00 : f32
    %364 = vector.shape_cast %32 : vector<1x256xi1> to vector<1x256xi1>
    %365 = vector.broadcast %364 : vector<1x256xi1> to vector<8x256xi1>
    %366 = vector.broadcast %cst_110 : f32 to vector<8x256xf32>
    %367 = arith.select %365, %363, %366 : vector<8x256xi1>, vector<8x256xf32>
    %c0_111 = arith.constant 0 : index
    %c13_112 = arith.constant 13 : index
    %368 = vector.load %arg6[%c0_111, %c13_112] : memref<8x50xf32, #tpu.memory_space<vmem>>, vector<8x1xf32>
    %369 = vector.broadcast %368 : vector<8x1xf32> to vector<8x256xf32>
    %370 = arith.mulf %369, %367 : vector<8x256xf32>
    %371 = arith.addf %350, %370 : vector<8x256xf32>
    %c0_113 = arith.constant 0 : index
    %c38 = arith.constant 38 : index
    %372 = vector.load %arg6[%c0_113, %c38] : memref<8x50xf32, #tpu.memory_space<vmem>>, vector<8x1xf32>
    %373 = vector.broadcast %372 : vector<8x1xf32> to vector<8x256xf32>
    %374 = arith.mulf %373, %367 : vector<8x256xf32>
    %375 = arith.addf %354, %374 : vector<8x256xf32>
    %c254_i32 = arith.constant 254 : i32
    %376 = tpu.dynamic_rotate %194 by %c254_i32 dim 1 : vector<8x256xf32>, i32 -> vector<8x256xf32>
    %cst_114 = arith.constant 0.000000e+00 : f32
    %377 = vector.shape_cast %42 : vector<1x256xi1> to vector<1x256xi1>
    %378 = vector.broadcast %377 : vector<1x256xi1> to vector<8x256xi1>
    %379 = vector.broadcast %cst_114 : f32 to vector<8x256xf32>
    %380 = arith.select %378, %376, %379 : vector<8x256xi1>, vector<8x256xf32>
    %c0_115 = arith.constant 0 : index
    %c14_116 = arith.constant 14 : index
    %381 = vector.load %arg6[%c0_115, %c14_116] : memref<8x50xf32, #tpu.memory_space<vmem>>, vector<8x1xf32>
    %382 = vector.broadcast %381 : vector<8x1xf32> to vector<8x256xf32>
    %383 = arith.mulf %382, %380 : vector<8x256xf32>
    %384 = arith.addf %358, %383 : vector<8x256xf32>
    %c0_117 = arith.constant 0 : index
    %c39 = arith.constant 39 : index
    %385 = vector.load %arg6[%c0_117, %c39] : memref<8x50xf32, #tpu.memory_space<vmem>>, vector<8x1xf32>
    %386 = vector.broadcast %385 : vector<8x1xf32> to vector<8x256xf32>
    %387 = arith.mulf %386, %380 : vector<8x256xf32>
    %388 = arith.addf %362, %387 : vector<8x256xf32>
    %c242_i32 = arith.constant 242 : i32
    %389 = tpu.dynamic_rotate %194 by %c242_i32 dim 1 : vector<8x256xf32>, i32 -> vector<8x256xf32>
    %390 = arith.andi %27, %12 : vector<1x256xi1>
    %cst_118 = arith.constant 0.000000e+00 : f32
    %391 = vector.shape_cast %390 : vector<1x256xi1> to vector<1x256xi1>
    %392 = vector.broadcast %391 : vector<1x256xi1> to vector<8x256xi1>
    %393 = vector.broadcast %cst_118 : f32 to vector<8x256xf32>
    %394 = arith.select %392, %389, %393 : vector<8x256xi1>, vector<8x256xf32>
    %c0_119 = arith.constant 0 : index
    %c15_120 = arith.constant 15 : index
    %395 = vector.load %arg6[%c0_119, %c15_120] : memref<8x50xf32, #tpu.memory_space<vmem>>, vector<8x1xf32>
    %396 = vector.broadcast %395 : vector<8x1xf32> to vector<8x256xf32>
    %397 = arith.mulf %396, %394 : vector<8x256xf32>
    %398 = arith.addf %371, %397 : vector<8x256xf32>
    %c0_121 = arith.constant 0 : index
    %c40 = arith.constant 40 : index
    %399 = vector.load %arg6[%c0_121, %c40] : memref<8x50xf32, #tpu.memory_space<vmem>>, vector<8x1xf32>
    %400 = vector.broadcast %399 : vector<8x1xf32> to vector<8x256xf32>
    %401 = arith.mulf %400, %394 : vector<8x256xf32>
    %402 = arith.addf %375, %401 : vector<8x256xf32>
    %c241_i32_122 = arith.constant 241 : i32
    %403 = tpu.dynamic_rotate %194 by %c241_i32_122 dim 1 : vector<8x256xf32>, i32 -> vector<8x256xf32>
    %404 = arith.andi %27, %22 : vector<1x256xi1>
    %cst_123 = arith.constant 0.000000e+00 : f32
    %405 = vector.shape_cast %404 : vector<1x256xi1> to vector<1x256xi1>
    %406 = vector.broadcast %405 : vector<1x256xi1> to vector<8x256xi1>
    %407 = vector.broadcast %cst_123 : f32 to vector<8x256xf32>
    %408 = arith.select %406, %403, %407 : vector<8x256xi1>, vector<8x256xf32>
    %c0_124 = arith.constant 0 : index
    %c16_125 = arith.constant 16 : index
    %409 = vector.load %arg6[%c0_124, %c16_125] : memref<8x50xf32, #tpu.memory_space<vmem>>, vector<8x1xf32>
    %410 = vector.broadcast %409 : vector<8x1xf32> to vector<8x256xf32>
    %411 = arith.mulf %410, %408 : vector<8x256xf32>
    %412 = arith.addf %384, %411 : vector<8x256xf32>
    %c0_126 = arith.constant 0 : index
    %c41 = arith.constant 41 : index
    %413 = vector.load %arg6[%c0_126, %c41] : memref<8x50xf32, #tpu.memory_space<vmem>>, vector<8x1xf32>
    %414 = vector.broadcast %413 : vector<8x1xf32> to vector<8x256xf32>
    %415 = arith.mulf %414, %408 : vector<8x256xf32>
    %416 = arith.addf %388, %415 : vector<8x256xf32>
    %c240_i32_127 = arith.constant 240 : i32
    %417 = tpu.dynamic_rotate %194 by %c240_i32_127 dim 1 : vector<8x256xf32>, i32 -> vector<8x256xf32>
    %cst_128 = arith.constant 0.000000e+00 : f32
    %418 = vector.shape_cast %27 : vector<1x256xi1> to vector<1x256xi1>
    %419 = vector.broadcast %418 : vector<1x256xi1> to vector<8x256xi1>
    %420 = vector.broadcast %cst_128 : f32 to vector<8x256xf32>
    %421 = arith.select %419, %417, %420 : vector<8x256xi1>, vector<8x256xf32>
    %c0_129 = arith.constant 0 : index
    %c17_130 = arith.constant 17 : index
    %422 = vector.load %arg6[%c0_129, %c17_130] : memref<8x50xf32, #tpu.memory_space<vmem>>, vector<8x1xf32>
    %423 = vector.broadcast %422 : vector<8x1xf32> to vector<8x256xf32>
    %424 = arith.mulf %423, %421 : vector<8x256xf32>
    %425 = arith.addf %398, %424 : vector<8x256xf32>
    %c0_131 = arith.constant 0 : index
    %c42 = arith.constant 42 : index
    %426 = vector.load %arg6[%c0_131, %c42] : memref<8x50xf32, #tpu.memory_space<vmem>>, vector<8x1xf32>
    %427 = vector.broadcast %426 : vector<8x1xf32> to vector<8x256xf32>
    %428 = arith.mulf %427, %421 : vector<8x256xf32>
    %429 = arith.addf %402, %428 : vector<8x256xf32>
    %c239_i32_132 = arith.constant 239 : i32
    %430 = tpu.dynamic_rotate %194 by %c239_i32_132 dim 1 : vector<8x256xf32>, i32 -> vector<8x256xf32>
    %431 = arith.andi %27, %32 : vector<1x256xi1>
    %cst_133 = arith.constant 0.000000e+00 : f32
    %432 = vector.shape_cast %431 : vector<1x256xi1> to vector<1x256xi1>
    %433 = vector.broadcast %432 : vector<1x256xi1> to vector<8x256xi1>
    %434 = vector.broadcast %cst_133 : f32 to vector<8x256xf32>
    %435 = arith.select %433, %430, %434 : vector<8x256xi1>, vector<8x256xf32>
    %c0_134 = arith.constant 0 : index
    %c18 = arith.constant 18 : index
    %436 = vector.load %arg6[%c0_134, %c18] : memref<8x50xf32, #tpu.memory_space<vmem>>, vector<8x1xf32>
    %437 = vector.broadcast %436 : vector<8x1xf32> to vector<8x256xf32>
    %438 = arith.mulf %437, %435 : vector<8x256xf32>
    %439 = arith.addf %412, %438 : vector<8x256xf32>
    %c0_135 = arith.constant 0 : index
    %c43 = arith.constant 43 : index
    %440 = vector.load %arg6[%c0_135, %c43] : memref<8x50xf32, #tpu.memory_space<vmem>>, vector<8x1xf32>
    %441 = vector.broadcast %440 : vector<8x1xf32> to vector<8x256xf32>
    %442 = arith.mulf %441, %435 : vector<8x256xf32>
    %443 = arith.addf %416, %442 : vector<8x256xf32>
    %c238_i32 = arith.constant 238 : i32
    %444 = tpu.dynamic_rotate %194 by %c238_i32 dim 1 : vector<8x256xf32>, i32 -> vector<8x256xf32>
    %445 = arith.andi %27, %42 : vector<1x256xi1>
    %cst_136 = arith.constant 0.000000e+00 : f32
    %446 = vector.shape_cast %445 : vector<1x256xi1> to vector<1x256xi1>
    %447 = vector.broadcast %446 : vector<1x256xi1> to vector<8x256xi1>
    %448 = vector.broadcast %cst_136 : f32 to vector<8x256xf32>
    %449 = arith.select %447, %444, %448 : vector<8x256xi1>, vector<8x256xf32>
    %c0_137 = arith.constant 0 : index
    %c19 = arith.constant 19 : index
    %450 = vector.load %arg6[%c0_137, %c19] : memref<8x50xf32, #tpu.memory_space<vmem>>, vector<8x1xf32>
    %451 = vector.broadcast %450 : vector<8x1xf32> to vector<8x256xf32>
    %452 = arith.mulf %451, %449 : vector<8x256xf32>
    %453 = arith.addf %425, %452 : vector<8x256xf32>
    %c0_138 = arith.constant 0 : index
    %c44 = arith.constant 44 : index
    %454 = vector.load %arg6[%c0_138, %c44] : memref<8x50xf32, #tpu.memory_space<vmem>>, vector<8x1xf32>
    %455 = vector.broadcast %454 : vector<8x1xf32> to vector<8x256xf32>
    %456 = arith.mulf %455, %449 : vector<8x256xf32>
    %457 = arith.addf %429, %456 : vector<8x256xf32>
    %c226_i32 = arith.constant 226 : i32
    %458 = tpu.dynamic_rotate %194 by %c226_i32 dim 1 : vector<8x256xf32>, i32 -> vector<8x256xf32>
    %459 = arith.andi %37, %12 : vector<1x256xi1>
    %cst_139 = arith.constant 0.000000e+00 : f32
    %460 = vector.shape_cast %459 : vector<1x256xi1> to vector<1x256xi1>
    %461 = vector.broadcast %460 : vector<1x256xi1> to vector<8x256xi1>
    %462 = vector.broadcast %cst_139 : f32 to vector<8x256xf32>
    %463 = arith.select %461, %458, %462 : vector<8x256xi1>, vector<8x256xf32>
    %c0_140 = arith.constant 0 : index
    %c20 = arith.constant 20 : index
    %464 = vector.load %arg6[%c0_140, %c20] : memref<8x50xf32, #tpu.memory_space<vmem>>, vector<8x1xf32>
    %465 = vector.broadcast %464 : vector<8x1xf32> to vector<8x256xf32>
    %466 = arith.mulf %465, %463 : vector<8x256xf32>
    %467 = arith.addf %439, %466 : vector<8x256xf32>
    %c0_141 = arith.constant 0 : index
    %c45 = arith.constant 45 : index
    %468 = vector.load %arg6[%c0_141, %c45] : memref<8x50xf32, #tpu.memory_space<vmem>>, vector<8x1xf32>
    %469 = vector.broadcast %468 : vector<8x1xf32> to vector<8x256xf32>
    %470 = arith.mulf %469, %463 : vector<8x256xf32>
    %471 = arith.addf %443, %470 : vector<8x256xf32>
    %c225_i32 = arith.constant 225 : i32
    %472 = tpu.dynamic_rotate %194 by %c225_i32 dim 1 : vector<8x256xf32>, i32 -> vector<8x256xf32>
    %473 = arith.andi %37, %22 : vector<1x256xi1>
    %cst_142 = arith.constant 0.000000e+00 : f32
    %474 = vector.shape_cast %473 : vector<1x256xi1> to vector<1x256xi1>
    %475 = vector.broadcast %474 : vector<1x256xi1> to vector<8x256xi1>
    %476 = vector.broadcast %cst_142 : f32 to vector<8x256xf32>
    %477 = arith.select %475, %472, %476 : vector<8x256xi1>, vector<8x256xf32>
    %c0_143 = arith.constant 0 : index
    %c21 = arith.constant 21 : index
    %478 = vector.load %arg6[%c0_143, %c21] : memref<8x50xf32, #tpu.memory_space<vmem>>, vector<8x1xf32>
    %479 = vector.broadcast %478 : vector<8x1xf32> to vector<8x256xf32>
    %480 = arith.mulf %479, %477 : vector<8x256xf32>
    %481 = arith.addf %453, %480 : vector<8x256xf32>
    %c0_144 = arith.constant 0 : index
    %c46 = arith.constant 46 : index
    %482 = vector.load %arg6[%c0_144, %c46] : memref<8x50xf32, #tpu.memory_space<vmem>>, vector<8x1xf32>
    %483 = vector.broadcast %482 : vector<8x1xf32> to vector<8x256xf32>
    %484 = arith.mulf %483, %477 : vector<8x256xf32>
    %485 = arith.addf %457, %484 : vector<8x256xf32>
    %c224_i32_145 = arith.constant 224 : i32
    %486 = tpu.dynamic_rotate %194 by %c224_i32_145 dim 1 : vector<8x256xf32>, i32 -> vector<8x256xf32>
    %cst_146 = arith.constant 0.000000e+00 : f32
    %487 = vector.shape_cast %37 : vector<1x256xi1> to vector<1x256xi1>
    %488 = vector.broadcast %487 : vector<1x256xi1> to vector<8x256xi1>
    %489 = vector.broadcast %cst_146 : f32 to vector<8x256xf32>
    %490 = arith.select %488, %486, %489 : vector<8x256xi1>, vector<8x256xf32>
    %c0_147 = arith.constant 0 : index
    %c22 = arith.constant 22 : index
    %491 = vector.load %arg6[%c0_147, %c22] : memref<8x50xf32, #tpu.memory_space<vmem>>, vector<8x1xf32>
    %492 = vector.broadcast %491 : vector<8x1xf32> to vector<8x256xf32>
    %493 = arith.mulf %492, %490 : vector<8x256xf32>
    %494 = arith.addf %467, %493 : vector<8x256xf32>
    %c0_148 = arith.constant 0 : index
    %c47 = arith.constant 47 : index
    %495 = vector.load %arg6[%c0_148, %c47] : memref<8x50xf32, #tpu.memory_space<vmem>>, vector<8x1xf32>
    %496 = vector.broadcast %495 : vector<8x1xf32> to vector<8x256xf32>
    %497 = arith.mulf %496, %490 : vector<8x256xf32>
    %498 = arith.addf %471, %497 : vector<8x256xf32>
    %c223_i32 = arith.constant 223 : i32
    %499 = tpu.dynamic_rotate %194 by %c223_i32 dim 1 : vector<8x256xf32>, i32 -> vector<8x256xf32>
    %500 = arith.andi %37, %32 : vector<1x256xi1>
    %cst_149 = arith.constant 0.000000e+00 : f32
    %501 = vector.shape_cast %500 : vector<1x256xi1> to vector<1x256xi1>
    %502 = vector.broadcast %501 : vector<1x256xi1> to vector<8x256xi1>
    %503 = vector.broadcast %cst_149 : f32 to vector<8x256xf32>
    %504 = arith.select %502, %499, %503 : vector<8x256xi1>, vector<8x256xf32>
    %c0_150 = arith.constant 0 : index
    %c23 = arith.constant 23 : index
    %505 = vector.load %arg6[%c0_150, %c23] : memref<8x50xf32, #tpu.memory_space<vmem>>, vector<8x1xf32>
    %506 = vector.broadcast %505 : vector<8x1xf32> to vector<8x256xf32>
    %507 = arith.mulf %506, %504 : vector<8x256xf32>
    %508 = arith.addf %481, %507 : vector<8x256xf32>
    %c0_151 = arith.constant 0 : index
    %c48 = arith.constant 48 : index
    %509 = vector.load %arg6[%c0_151, %c48] : memref<8x50xf32, #tpu.memory_space<vmem>>, vector<8x1xf32>
    %510 = vector.broadcast %509 : vector<8x1xf32> to vector<8x256xf32>
    %511 = arith.mulf %510, %504 : vector<8x256xf32>
    %512 = arith.addf %485, %511 : vector<8x256xf32>
    %c222_i32 = arith.constant 222 : i32
    %513 = tpu.dynamic_rotate %194 by %c222_i32 dim 1 : vector<8x256xf32>, i32 -> vector<8x256xf32>
    %514 = arith.andi %37, %42 : vector<1x256xi1>
    %cst_152 = arith.constant 0.000000e+00 : f32
    %515 = vector.shape_cast %514 : vector<1x256xi1> to vector<1x256xi1>
    %516 = vector.broadcast %515 : vector<1x256xi1> to vector<8x256xi1>
    %517 = vector.broadcast %cst_152 : f32 to vector<8x256xf32>
    %518 = arith.select %516, %513, %517 : vector<8x256xi1>, vector<8x256xf32>
    %c0_153 = arith.constant 0 : index
    %c24 = arith.constant 24 : index
    %519 = vector.load %arg6[%c0_153, %c24] : memref<8x50xf32, #tpu.memory_space<vmem>>, vector<8x1xf32>
    %520 = vector.broadcast %519 : vector<8x1xf32> to vector<8x256xf32>
    %521 = arith.mulf %520, %518 : vector<8x256xf32>
    %522 = arith.addf %494, %521 : vector<8x256xf32>
    %c0_154 = arith.constant 0 : index
    %c49 = arith.constant 49 : index
    %523 = vector.load %arg6[%c0_154, %c49] : memref<8x50xf32, #tpu.memory_space<vmem>>, vector<8x1xf32>
    %524 = vector.broadcast %523 : vector<8x1xf32> to vector<8x256xf32>
    %525 = arith.mulf %524, %518 : vector<8x256xf32>
    %526 = arith.addf %498, %525 : vector<8x256xf32>
    %527 = arith.addf %522, %508 : vector<8x256xf32>
    %cst_155 = arith.constant dense<0.000000e+00> : vector<256xf32>
    %528 = vector.multi_reduction <add>, %527, %cst_155 [0] : vector<8x256xf32> to vector<256xf32>
    %529 = vector.shape_cast %528 : vector<256xf32> to vector<1x256xf32>
    %c0_156 = arith.constant 0 : index
    %530 = memref.load %arg7[%c0_156] : memref<2xf32, #tpu.memory_space<smem>>
    %531 = vector.broadcast %530 : f32 to vector<1x256xf32>
    %532 = arith.addf %529, %531 : vector<1x256xf32>
    %cst_157 = arith.constant 0.000000e+00 : f32
    %533 = vector.broadcast %cst_157 : f32 to vector<1x256xf32>
    %534 = arith.maximumf %532, %533 : vector<1x256xf32>
    %535 = arith.addf %526, %512 : vector<8x256xf32>
    %cst_158 = arith.constant dense<0.000000e+00> : vector<256xf32>
    %536 = vector.multi_reduction <add>, %535, %cst_158 [0] : vector<8x256xf32> to vector<256xf32>
    %537 = vector.shape_cast %536 : vector<256xf32> to vector<1x256xf32>
    %c1_159 = arith.constant 1 : index
    %538 = memref.load %arg7[%c1_159] : memref<2xf32, #tpu.memory_space<smem>>
    %539 = vector.broadcast %538 : f32 to vector<1x256xf32>
    %540 = arith.addf %537, %539 : vector<1x256xf32>
    %cst_160 = arith.constant 0.000000e+00 : f32
    %541 = vector.broadcast %cst_160 : f32 to vector<1x256xf32>
    %542 = arith.maximumf %540, %541 : vector<1x256xf32>
    %543 = tpu.concatenate %57, %64, %185, %193, %534, %542 in 0 : vector<1x256xf32>, vector<1x256xf32>, vector<1x256xf32>, vector<1x256xf32>, vector<1x256xf32>, vector<1x256xf32> -> vector<6x256xf32>
    %c0_161 = arith.constant 0 : index
    %c0_162 = arith.constant 0 : index
    %544 = vector.load %arg8[%c0_161, %c0_162] : memref<6x6xf32, #tpu.memory_space<vmem>>, vector<6x1xf32>
    %545 = vector.broadcast %544 : vector<6x1xf32> to vector<6x256xf32>
    %546 = arith.mulf %545, %543 : vector<6x256xf32>
    %c0_163 = arith.constant 0 : index
    %c1_164 = arith.constant 1 : index
    %547 = vector.load %arg8[%c0_163, %c1_164] : memref<6x6xf32, #tpu.memory_space<vmem>>, vector<6x1xf32>
    %548 = vector.broadcast %547 : vector<6x1xf32> to vector<6x256xf32>
    %549 = arith.mulf %548, %543 : vector<6x256xf32>
    %c0_165 = arith.constant 0 : index
    %c2_166 = arith.constant 2 : index
    %550 = vector.load %arg8[%c0_165, %c2_166] : memref<6x6xf32, #tpu.memory_space<vmem>>, vector<6x1xf32>
    %551 = vector.broadcast %550 : vector<6x1xf32> to vector<6x256xf32>
    %552 = arith.mulf %551, %543 : vector<6x256xf32>
    %c0_167 = arith.constant 0 : index
    %c3_168 = arith.constant 3 : index
    %553 = vector.load %arg8[%c0_167, %c3_168] : memref<6x6xf32, #tpu.memory_space<vmem>>, vector<6x1xf32>
    %554 = vector.broadcast %553 : vector<6x1xf32> to vector<6x256xf32>
    %555 = arith.mulf %554, %543 : vector<6x256xf32>
    %c0_169 = arith.constant 0 : index
    %c4_170 = arith.constant 4 : index
    %556 = vector.load %arg8[%c0_169, %c4_170] : memref<6x6xf32, #tpu.memory_space<vmem>>, vector<6x1xf32>
    %557 = vector.broadcast %556 : vector<6x1xf32> to vector<6x256xf32>
    %558 = arith.mulf %557, %543 : vector<6x256xf32>
    %c0_171 = arith.constant 0 : index
    %c5_172 = arith.constant 5 : index
    %559 = vector.load %arg8[%c0_171, %c5_172] : memref<6x6xf32, #tpu.memory_space<vmem>>, vector<6x1xf32>
    %560 = vector.broadcast %559 : vector<6x1xf32> to vector<6x256xf32>
    %561 = arith.mulf %560, %543 : vector<6x256xf32>
    %cst_173 = arith.constant dense<0.000000e+00> : vector<256xf32>
    %562 = vector.multi_reduction <add>, %546, %cst_173 [0] : vector<6x256xf32> to vector<256xf32>
    %563 = vector.shape_cast %562 : vector<256xf32> to vector<1x256xf32>
    %c0_174 = arith.constant 0 : index
    %564 = memref.load %arg9[%c0_174] : memref<6xf32, #tpu.memory_space<smem>>
    %565 = vector.broadcast %564 : f32 to vector<1x256xf32>
    %566 = arith.addf %563, %565 : vector<1x256xf32>
    %cst_175 = arith.constant 0.000000e+00 : f32
    %567 = vector.broadcast %cst_175 : f32 to vector<1x256xf32>
    %568 = arith.maximumf %566, %567 : vector<1x256xf32>
    %cst_176 = arith.constant dense<0.000000e+00> : vector<256xf32>
    %569 = vector.multi_reduction <add>, %549, %cst_176 [0] : vector<6x256xf32> to vector<256xf32>
    %570 = vector.shape_cast %569 : vector<256xf32> to vector<1x256xf32>
    %c1_177 = arith.constant 1 : index
    %571 = memref.load %arg9[%c1_177] : memref<6xf32, #tpu.memory_space<smem>>
    %572 = vector.broadcast %571 : f32 to vector<1x256xf32>
    %573 = arith.addf %570, %572 : vector<1x256xf32>
    %cst_178 = arith.constant 0.000000e+00 : f32
    %574 = vector.broadcast %cst_178 : f32 to vector<1x256xf32>
    %575 = arith.maximumf %573, %574 : vector<1x256xf32>
    %cst_179 = arith.constant dense<0.000000e+00> : vector<256xf32>
    %576 = vector.multi_reduction <add>, %552, %cst_179 [0] : vector<6x256xf32> to vector<256xf32>
    %577 = vector.shape_cast %576 : vector<256xf32> to vector<1x256xf32>
    %c2_180 = arith.constant 2 : index
    %578 = memref.load %arg9[%c2_180] : memref<6xf32, #tpu.memory_space<smem>>
    %579 = vector.broadcast %578 : f32 to vector<1x256xf32>
    %580 = arith.addf %577, %579 : vector<1x256xf32>
    %cst_181 = arith.constant 0.000000e+00 : f32
    %581 = vector.broadcast %cst_181 : f32 to vector<1x256xf32>
    %582 = arith.maximumf %580, %581 : vector<1x256xf32>
    %cst_182 = arith.constant dense<0.000000e+00> : vector<256xf32>
    %583 = vector.multi_reduction <add>, %555, %cst_182 [0] : vector<6x256xf32> to vector<256xf32>
    %584 = vector.shape_cast %583 : vector<256xf32> to vector<1x256xf32>
    %c3_183 = arith.constant 3 : index
    %585 = memref.load %arg9[%c3_183] : memref<6xf32, #tpu.memory_space<smem>>
    %586 = vector.broadcast %585 : f32 to vector<1x256xf32>
    %587 = arith.addf %584, %586 : vector<1x256xf32>
    %cst_184 = arith.constant 0.000000e+00 : f32
    %588 = vector.broadcast %cst_184 : f32 to vector<1x256xf32>
    %589 = arith.maximumf %587, %588 : vector<1x256xf32>
    %cst_185 = arith.constant dense<0.000000e+00> : vector<256xf32>
    %590 = vector.multi_reduction <add>, %558, %cst_185 [0] : vector<6x256xf32> to vector<256xf32>
    %591 = vector.shape_cast %590 : vector<256xf32> to vector<1x256xf32>
    %c4_186 = arith.constant 4 : index
    %592 = memref.load %arg9[%c4_186] : memref<6xf32, #tpu.memory_space<smem>>
    %593 = vector.broadcast %592 : f32 to vector<1x256xf32>
    %594 = arith.addf %591, %593 : vector<1x256xf32>
    %cst_187 = arith.constant 0.000000e+00 : f32
    %595 = vector.broadcast %cst_187 : f32 to vector<1x256xf32>
    %596 = arith.maximumf %594, %595 : vector<1x256xf32>
    %cst_188 = arith.constant dense<0.000000e+00> : vector<256xf32>
    %597 = vector.multi_reduction <add>, %561, %cst_188 [0] : vector<6x256xf32> to vector<256xf32>
    %598 = vector.shape_cast %597 : vector<256xf32> to vector<1x256xf32>
    %c5_189 = arith.constant 5 : index
    %599 = memref.load %arg9[%c5_189] : memref<6xf32, #tpu.memory_space<smem>>
    %600 = vector.broadcast %599 : f32 to vector<1x256xf32>
    %601 = arith.addf %598, %600 : vector<1x256xf32>
    %cst_190 = arith.constant 0.000000e+00 : f32
    %602 = vector.broadcast %cst_190 : f32 to vector<1x256xf32>
    %603 = arith.maximumf %601, %602 : vector<1x256xf32>
    %604 = tpu.concatenate %568, %575, %582, %589, %596, %603 in 0 : vector<1x256xf32>, vector<1x256xf32>, vector<1x256xf32>, vector<1x256xf32>, vector<1x256xf32>, vector<1x256xf32> -> vector<6x256xf32>
    %c0_191 = arith.constant 0 : index
    %c0_192 = arith.constant 0 : index
    %c0_193 = arith.constant 0 : index
    %605 = vector.load %arg10[%c0_191, %c0_192, %c0_193] : memref<1x6x256xf32, #tpu.memory_space<vmem>>, vector<1x6x256xf32>
    %606 = vector.shape_cast %605 : vector<1x6x256xf32> to vector<6x256xf32>
    %607 = vector.shape_cast %604 : vector<6x256xf32> to vector<1x6x256xf32>
    tpu.vector_store %arg10[%c0_191, %c0_192, %c0_193], %607 {strides = array<i32>} : memref<1x6x256xf32, #tpu.memory_space<vmem>>, vector<1x6x256xf32>,
    return
  }
  func.func @transform_0(%arg0: i32) -> (i32, i32, i32) {
    %c0_i32 = arith.constant 0 : i32
    %c0_i32_0 = arith.constant 0 : i32
    %c0_i32_1 = arith.constant 0 : i32
    return %arg0, %c0_i32, %c0_i32_0 : i32, i32, i32
  }
  func.func @transform_1(%arg0: i32) -> (i32, i32) {
    %c0_i32 = arith.constant 0 : i32
    %c0_i32_0 = arith.constant 0 : i32
    %c0_i32_1 = arith.constant 0 : i32
    return %c0_i32, %c0_i32_0 : i32, i32
  }
  func.func @transform_2(%arg0: i32) -> i32 {
    %c0_i32 = arith.constant 0 : i32
    %c0_i32_0 = arith.constant 0 : i32
    return %c0_i32 : i32
  }
  func.func @transform_3(%arg0: i32) -> (i32, i32) {
    %c0_i32 = arith.constant 0 : i32
    %c0_i32_0 = arith.constant 0 : i32
    %c0_i32_1 = arith.constant 0 : i32
    return %c0_i32, %c0_i32_0 : i32, i32
  }
  func.func @transform_4(%arg0: i32) -> i32 {
    %c0_i32 = arith.constant 0 : i32
    %c0_i32_0 = arith.constant 0 : i32
    return %c0_i32 : i32
  }
  func.func @transform_5(%arg0: i32) -> (i32, i32) {
    %c0_i32 = arith.constant 0 : i32
    %c0_i32_0 = arith.constant 0 : i32
    %c0_i32_1 = arith.constant 0 : i32
    return %c0_i32, %c0_i32_0 : i32, i32
  }
  func.func @transform_6(%arg0: i32) -> i32 {
    %c0_i32 = arith.constant 0 : i32
    %c0_i32_0 = arith.constant 0 : i32
    return %c0_i32 : i32
  }
  func.func @transform_7(%arg0: i32) -> (i32, i32) {
    %c0_i32 = arith.constant 0 : i32
    %c0_i32_0 = arith.constant 0 : i32
    %c0_i32_1 = arith.constant 0 : i32
    return %c0_i32, %c0_i32_0 : i32, i32
  }
  func.func @transform_8(%arg0: i32) -> i32 {
    %c0_i32 = arith.constant 0 : i32
    %c0_i32_0 = arith.constant 0 : i32
    return %c0_i32 : i32
  }
  func.func @transform_9(%arg0: i32) -> (i32, i32, i32) {
    %c0_i32 = arith.constant 0 : i32
    %c0_i32_0 = arith.constant 0 : i32
    %c0_i32_1 = arith.constant 0 : i32
    return %arg0, %c0_i32, %c0_i32_0 : i32, i32, i32
  }
}

</mosaic_0001>

<llo_original>
// kernel: multi_scale_conv_forward.1
$region0: #{multi_scale_conv_forward.1}
  #allocation0 [shape = 'u32[]', space=smem, size = 0x4, offset = 0x4, fixed_abs, tag = 'smem constant byte address 0x4 - core index']
  #allocation1 [shape = 'u32[144,128]{1,0:T(1,128)}', space=vmem, size = 0x12000, scoped, tag = 'internal scratch']
  %s0 = inlined_call_operand.vmem [shape: f32[2,4,256], index: 0, kind: input, shape index: {}]
  %s1 = inlined_call_operand.vmem [shape: f32[4,2], index: 1, kind: input, shape index: {}]
  %s2 = inlined_call_operand.vmem [shape: f32[2], index: 2, kind: input, shape index: {}]
  %s3 = inlined_call_operand.vmem [shape: f32[6,18], index: 3, kind: input, shape index: {}]
  %s4 = inlined_call_operand.vmem [shape: f32[2], index: 4, kind: input, shape index: {}]
  %s5 = inlined_call_operand.vmem [shape: f32[8,50], index: 5, kind: input, shape index: {}]
  %s6 = inlined_call_operand.vmem [shape: f32[2], index: 6, kind: input, shape index: {}]
  %s7 = inlined_call_operand.vmem [shape: f32[6,6], index: 7, kind: input, shape index: {}]
  %s8 = inlined_call_operand.vmem [shape: f32[6], index: 8, kind: input, shape index: {}]
  %s9 = inlined_call_operand.vmem [shape: f32[2,6,256], index: 9, kind: output, shape index: {}]
  %s10 = sld [smem:[#allocation0]]
  $region85: #{multi_scale_conv_forward.1} parent=0
    _
  %s12 = ssub.s32 1, %s10
  %s13 = scalar_select 0, %s12, %s10
  $region1: #{multi_scale_conv_forward.1} parent=0
    #allocation2 [shape = 'u8[512]{0}', space=smem, size = 0x200, scoped, tag = 'input window, operand 2, single buffered']
    #allocation3 [shape = 's32[2]{0}', space=sflag, size = 0x8, scoped, tag = 'scoped memory for multi_scale_conv_forward.1']
    #allocation4 [shape = 'u8[512]{0}', space=smem, size = 0x200, scoped, tag = 'input window, operand 4, single buffered']
    #allocation5 [shape = 's32[1]{0}', space=sflag, size = 0x4, scoped, tag = 'scoped memory for multi_scale_conv_forward.1']
    #allocation6 [shape = 'u8[512]{0}', space=smem, size = 0x200, scoped, tag = 'input window, operand 6, single buffered']
    #allocation7 [shape = 'u8[512]{0}', space=smem, size = 0x200, scoped, tag = 'input window, operand 8, single buffered']
    #allocation8 [shape = 's32[1]{0}', space=sflag, size = 0x4, scoped, tag = 'scoped memory for multi_scale_conv_forward.1']
    %14 = vsyncpa [#allocation3], 0
    %15 = vsyncpa [#allocation5], 0
    %16 = vsyncpa [#allocation8], 0
    loop: start=0, step=1, limit=4
    $region2: #{multi_scale_conv_forward.1} parent=1 // loop_pre_header
      _
    $region3: #{multi_scale_conv_forward.1} parent=1 // loop_header
      %s18 = sphi 0, %s22
      %p19 = scmp.ge.s32.totalorder %s18, 4
      %s28 = sphi 0, %s30
      %s31 = sphi 0, %s28
      %s32 = sphi 0, %s31
      %s48 = sphi 0, %s32
      %s52 = sphi 0, %s52
      %s54 = sphi 0, %s52
      %s55 = sphi 0, %s54
      %s69 = sphi 0, %s55
      %s73 = sphi 0, %s73
      %s75 = sphi 0, %s73
      %s76 = sphi 0, %s75
      %s90 = sphi 0, %s76
      %s94 = sphi 0, %s94
      %s96 = sphi 0, %s94
      %s97 = sphi 0, %s96
      %s111 = sphi 0, %s97
      %s115 = sphi 0, %s115
      %s117 = sphi 0, %s115
      %s118 = sphi 0, %s117
      %s132 = sphi 0, %s118
      %s136 = sphi 0, %s136
      %s138 = sphi 0, %s136
      %s139 = sphi 0, %s138
      %s153 = sphi 0, %s139
      %s157 = sphi 0, %s157
      %s159 = sphi 0, %s157
      %s160 = sphi 0, %s159
      %s174 = sphi 0, %s160
      %s178 = sphi 0, %s178
      %s180 = sphi 0, %s178
      %s181 = sphi 0, %s180
      %s195 = sphi 0, %s181
      %s199 = sphi 0, %s199
      %s201 = sphi 0, %s199
      %s202 = sphi 0, %s201
      %s216 = sphi 0, %s202
      %s222 = sphi 0, %s224
      %s225 = sphi 0, %s222
      %s226 = sphi 0, %s225
      %s242 = sphi 0, %s226
    $region4: #{multi_scale_conv_forward.1} parent=1 // loop_header_branch
      %21 = sbr.rel (%p19) target = $region8
    $region5: #{multi_scale_conv_forward.1} parent=1 // loop_body
      %s23 = ssub.s32 %s18, 1
      %s24 = ssub.s32 %s18, 2
      %s25 = sadd.s32 %s18, 1
      %s26 = ssub.s32 %s18, %s25
      %p27 = scmp.eq.s32.totalorder %s26, 0
      %s29 = sadd.s32 %s28, 1
      %s30 = scalar_select %p27, %s28, %s29
      %p33 = pneg %p27
      %p34 = scmp.eq.s32.totalorder %s18, 1
      %p35 = por %p33, %p34
      %p36 = scmp.ne.s32.totalorder %s28, %s31
      %p37 = scmp.eq.s32.totalorder %s18, 0
      %p38 = por %p36, %p37
      %p39 = scmp.ne.s32.totalorder %s28, %s31
      %p40 = scmp.eq.s32.totalorder %s23, 1
      %p41 = por %p39, %p40
      %p42 = scmp.ne.s32.totalorder %s31, %s32
      %p43 = scmp.eq.s32.totalorder %s23, 0
      %p44 = por %p42, %p43
      %p45 = scmp.ne.s32.totalorder %s31, %s32
      %p46 = scmp.eq.s32.totalorder %s24, 1
      %p47 = por %p45, %p46
      %p49 = scmp.ne.s32.totalorder %s32, %s48
      %p50 = scmp.eq.s32.totalorder %s24, 0
      %p51 = por %p49, %p50
      %s53 = sadd.s32 %s52, 1
      %p56 = scmp.eq.s32.totalorder %s18, 1
      %p57 = scmp.ne.s32.totalorder %s52, %s54
      %p58 = scmp.eq.s32.totalorder %s18, 0
      %p59 = por %p57, %p58
      %p60 = scmp.ne.s32.totalorder %s52, %s54
      %p61 = scmp.eq.s32.totalorder %s23, 1
      %p62 = por %p60, %p61
      %p63 = scmp.ne.s32.totalorder %s54, %s55
      %p64 = scmp.eq.s32.totalorder %s23, 0
      %p65 = por %p63, %p64
      %p66 = scmp.ne.s32.totalorder %s54, %s55
      %p67 = scmp.eq.s32.totalorder %s24, 1
      %p68 = por %p66, %p67
      %p70 = scmp.ne.s32.totalorder %s55, %s69
      %p71 = scmp.eq.s32.totalorder %s24, 0
      %p72 = por %p70, %p71
      %s74 = sadd.s32 %s73, 1
      %p77 = scmp.eq.s32.totalorder %s18, 1
      %p78 = scmp.ne.s32.totalorder %s73, %s75
      %p79 = scmp.eq.s32.totalorder %s18, 0
      %p80 = por %p78, %p79
      %p81 = scmp.ne.s32.totalorder %s73, %s75
      %p82 = scmp.eq.s32.totalorder %s23, 1
      %p83 = por %p81, %p82
      %p84 = scmp.ne.s32.totalorder %s75, %s76
      %p85 = scmp.eq.s32.totalorder %s23, 0
      %p86 = por %p84, %p85
      %p87 = scmp.ne.s32.totalorder %s75, %s76
      %p88 = scmp.eq.s32.totalorder %s24, 1
      %p89 = por %p87, %p88
      %p91 = scmp.ne.s32.totalorder %s76, %s90
      %p92 = scmp.eq.s32.totalorder %s24, 0
      %p93 = por %p91, %p92
      %s95 = sadd.s32 %s94, 1
      %p98 = scmp.eq.s32.totalorder %s18, 1
      %p99 = scmp.ne.s32.totalorder %s94, %s96
      %p100 = scmp.eq.s32.totalorder %s18, 0
      %p101 = por %p99, %p100
      %p102 = scmp.ne.s32.totalorder %s94, %s96
      %p103 = scmp.eq.s32.totalorder %s23, 1
      %p104 = por %p102, %p103
      %p105 = scmp.ne.s32.totalorder %s96, %s97
      %p106 = scmp.eq.s32.totalorder %s23, 0
      %p107 = por %p105, %p106
      %p108 = scmp.ne.s32.totalorder %s96, %s97
      %p109 = scmp.eq.s32.totalorder %s24, 1
      %p110 = por %p108, %p109
      %p112 = scmp.ne.s32.totalorder %s97, %s111
      %p113 = scmp.eq.s32.totalorder %s24, 0
      %p114 = por %p112, %p113
      %s116 = sadd.s32 %s115, 1
      %p119 = scmp.eq.s32.totalorder %s18, 1
      %p120 = scmp.ne.s32.totalorder %s115, %s117
      %p121 = scmp.eq.s32.totalorder %s18, 0
      %p122 = por %p120, %p121
      %p123 = scmp.ne.s32.totalorder %s115, %s117
      %p124 = scmp.eq.s32.totalorder %s23, 1
      %p125 = por %p123, %p124
      %p126 = scmp.ne.s32.totalorder %s117, %s118
      %p127 = scmp.eq.s32.totalorder %s23, 0
      %p128 = por %p126, %p127
      %p129 = scmp.ne.s32.totalorder %s117, %s118
      %p130 = scmp.eq.s32.totalorder %s24, 1
      %p131 = por %p129, %p130
      %p133 = scmp.ne.s32.totalorder %s118, %s132
      %p134 = scmp.eq.s32.totalorder %s24, 0
      %p135 = por %p133, %p134
      %s137 = sadd.s32 %s136, 1
      %p140 = scmp.eq.s32.totalorder %s18, 1
      %p141 = scmp.ne.s32.totalorder %s136, %s138
      %p142 = scmp.eq.s32.totalorder %s18, 0
      %p143 = por %p141, %p142
      %p144 = scmp.ne.s32.totalorder %s136, %s138
      %p145 = scmp.eq.s32.totalorder %s23, 1
      %p146 = por %p144, %p145
      %p147 = scmp.ne.s32.totalorder %s138, %s139
      %p148 = scmp.eq.s32.totalorder %s23, 0
      %p149 = por %p147, %p148
      %p150 = scmp.ne.s32.totalorder %s138, %s139
      %p151 = scmp.eq.s32.totalorder %s24, 1
      %p152 = por %p150, %p151
      %p154 = scmp.ne.s32.totalorder %s139, %s153
      %p155 = scmp.eq.s32.totalorder %s24, 0
      %p156 = por %p154, %p155
      %s158 = sadd.s32 %s157, 1
      %p161 = scmp.eq.s32.totalorder %s18, 1
      %p162 = scmp.ne.s32.totalorder %s157, %s159
      %p163 = scmp.eq.s32.totalorder %s18, 0
      %p164 = por %p162, %p163
      %p165 = scmp.ne.s32.totalorder %s157, %s159
      %p166 = scmp.eq.s32.totalorder %s23, 1
      %p167 = por %p165, %p166
      %p168 = scmp.ne.s32.totalorder %s159, %s160
      %p169 = scmp.eq.s32.totalorder %s23, 0
      %p170 = por %p168, %p169
      %p171 = scmp.ne.s32.totalorder %s159, %s160
      %p172 = scmp.eq.s32.totalorder %s24, 1
      %p173 = por %p171, %p172
      %p175 = scmp.ne.s32.totalorder %s160, %s174
      %p176 = scmp.eq.s32.totalorder %s24, 0
      %p177 = por %p175, %p176
      %s179 = sadd.s32 %s178, 1
      %p182 = scmp.eq.s32.totalorder %s18, 1
      %p183 = scmp.ne.s32.totalorder %s178, %s180
      %p184 = scmp.eq.s32.totalorder %s18, 0
      %p185 = por %p183, %p184
      %p186 = scmp.ne.s32.totalorder %s178, %s180
      %p187 = scmp.eq.s32.totalorder %s23, 1
      %p188 = por %p186, %p187
      %p189 = scmp.ne.s32.totalorder %s180, %s181
      %p190 = scmp.eq.s32.totalorder %s23, 0
      %p191 = por %p189, %p190
      %p192 = scmp.ne.s32.totalorder %s180, %s181
      %p193 = scmp.eq.s32.totalorder %s24, 1
      %p194 = por %p192, %p193
      %p196 = scmp.ne.s32.totalorder %s181, %s195
      %p197 = scmp.eq.s32.totalorder %s24, 0
      %p198 = por %p196, %p197
      %s200 = sadd.s32 %s199, 1
      %p203 = scmp.eq.s32.totalorder %s18, 1
      %p204 = scmp.ne.s32.totalorder %s199, %s201
      %p205 = scmp.eq.s32.totalorder %s18, 0
      %p206 = por %p204, %p205
      %p207 = scmp.ne.s32.totalorder %s199, %s201
      %p208 = scmp.eq.s32.totalorder %s23, 1
      %p209 = por %p207, %p208
      %p210 = scmp.ne.s32.totalorder %s201, %s202
      %p211 = scmp.eq.s32.totalorder %s23, 0
      %p212 = por %p210, %p211
      %p213 = scmp.ne.s32.totalorder %s201, %s202
      %p214 = scmp.eq.s32.totalorder %s24, 1
      %p215 = por %p213, %p214
      %p217 = scmp.ne.s32.totalorder %s202, %s216
      %p218 = scmp.eq.s32.totalorder %s24, 0
      %p219 = por %p217, %p218
      %s220 = ssub.s32 %s18, %s25
      %p221 = scmp.eq.s32.totalorder %s220, 0
      %s223 = sadd.s32 %s222, 1
      %s224 = scalar_select %p221, %s222, %s223
      %p227 = pneg %p221
      %p228 = scmp.eq.s32.totalorder %s18, 1
      %p229 = por %p227, %p228
      %p230 = scmp.ne.s32.totalorder %s222, %s225
      %p231 = scmp.eq.s32.totalorder %s18, 0
      %p232 = por %p230, %p231
      %p233 = scmp.ne.s32.totalorder %s222, %s225
      %p234 = scmp.eq.s32.totalorder %s23, 1
      %p235 = por %p233, %p234
      %p236 = scmp.ne.s32.totalorder %s225, %s226
      %p237 = scmp.eq.s32.totalorder %s23, 0
      %p238 = por %p236, %p237
      %p239 = scmp.ne.s32.totalorder %s225, %s226
      %p240 = scmp.eq.s32.totalorder %s24, 1
      %p241 = por %p239, %p240
      %p243 = scmp.ne.s32.totalorder %s226, %s242
      %p244 = scmp.eq.s32.totalorder %s24, 0
      %p245 = por %p243, %p244
      %p246 = scmp.le.s32.totalorder 1, %s18
      %p247 = scmp.lt.s32.totalorder %s18, 3
      %p248 = pnand %p246, %p247
      %p249 = pneg %p248
      // Predicated region
      $region9: #{multi_scale_conv_forward.1} parent=5 // pred_check
        _
      $region10: #{multi_scale_conv_forward.1} parent=5 // pred_check_branch
        %251 = sbr.rel (%p248) target = $region12
      $region11: #{multi_scale_conv_forward.1} parent=5 // pred_region
        %s252 = ssub.s32 %s18, 1
        // Predicated region
        $region13: #{multi_scale_conv_forward.1} parent=11 // pred_check
          %p253 = pneg %p65
        $region14: #{multi_scale_conv_forward.1} parent=11 // pred_check_branch
          %255 = sbr.rel (%p253) target = $region16
        $region15: #{multi_scale_conv_forward.1} parent=11 // pred_region
          _
        $region16: #{multi_scale_conv_forward.1} parent=11 // pred_fallthru
          _
        // Predicated region
        $region17: #{multi_scale_conv_forward.1} parent=11 // pred_check
          %p256 = pneg %p86
        $region18: #{multi_scale_conv_forward.1} parent=11 // pred_check_branch
          %258 = sbr.rel (%p256) target = $region20
        $region19: #{multi_scale_conv_forward.1} parent=11 // pred_region
          %s260 = ssub.s32 16, 16
          %261 = vsyncadd [#allocation3], %s260
          %s263 = sshll.u32 %s2, 4
          %s264 = int_to_ptr.vmem [resolvable:$true] %s263
          %266 = dma.vmem_to_smem %s264, 16, [#allocation2], [#allocation3]
        $region20: #{multi_scale_conv_forward.1} parent=11 // pred_fallthru
          _
        // Predicated region
        $region21: #{multi_scale_conv_forward.1} parent=11 // pred_check
          %p267 = pneg %p107
        $region22: #{multi_scale_conv_forward.1} parent=11 // pred_check_branch
          %269 = sbr.rel (%p267) target = $region24
        $region23: #{multi_scale_conv_forward.1} parent=11 // pred_region
          _
        $region24: #{multi_scale_conv_forward.1} parent=11 // pred_fallthru
          _
        // Predicated region
        $region25: #{multi_scale_conv_forward.1} parent=11 // pred_check
          %p270 = pneg %p128
        $region26: #{multi_scale_conv_forward.1} parent=11 // pred_check_branch
          %272 = sbr.rel (%p270) target = $region28
        $region27: #{multi_scale_conv_forward.1} parent=11 // pred_region
          %s274 = ssub.s32 16, 16
          %275 = vsyncadd [#allocation5], %s274
          %s277 = sshll.u32 %s4, 4
          %s278 = int_to_ptr.vmem [resolvable:$true] %s277
          %280 = dma.vmem_to_smem %s278, 16, [#allocation4], [#allocation5]
        $region28: #{multi_scale_conv_forward.1} parent=11 // pred_fallthru
          _
        // Predicated region
        $region29: #{multi_scale_conv_forward.1} parent=11 // pred_check
          %p281 = pneg %p149
        $region30: #{multi_scale_conv_forward.1} parent=11 // pred_check_branch
          %283 = sbr.rel (%p281) target = $region32
        $region31: #{multi_scale_conv_forward.1} parent=11 // pred_region
          _
        $region32: #{multi_scale_conv_forward.1} parent=11 // pred_fallthru
          _
        // Predicated region
        $region33: #{multi_scale_conv_forward.1} parent=11 // pred_check
          %p284 = pneg %p170
        $region34: #{multi_scale_conv_forward.1} parent=11 // pred_check_branch
          %286 = sbr.rel (%p284) target = $region36
        $region35: #{multi_scale_conv_forward.1} parent=11 // pred_region
          %s288 = ssub.s32 16, 16
          %289 = vsyncadd [#allocation5], %s288
          %s291 = sshll.u32 %s6, 4
          %s292 = int_to_ptr.vmem [resolvable:$true] %s291
          %294 = dma.vmem_to_smem %s292, 16, [#allocation6], [#allocation5]
        $region36: #{multi_scale_conv_forward.1} parent=11 // pred_fallthru
          _
        // Predicated region
        $region37: #{multi_scale_conv_forward.1} parent=11 // pred_check
          %p295 = pneg %p191
        $region38: #{multi_scale_conv_forward.1} parent=11 // pred_check_branch
          %297 = sbr.rel (%p295) target = $region40
        $region39: #{multi_scale_conv_forward.1} parent=11 // pred_region
          _
        $region40: #{multi_scale_conv_forward.1} parent=11 // pred_fallthru
          _
        // Predicated region
        $region41: #{multi_scale_conv_forward.1} parent=11 // pred_check
          %p298 = pneg %p212
        $region42: #{multi_scale_conv_forward.1} parent=11 // pred_check_branch
          %300 = sbr.rel (%p298) target = $region44
        $region43: #{multi_scale_conv_forward.1} parent=11 // pred_region
          %s302 = ssub.s32 16, 16
          %303 = vsyncadd [#allocation8], %s302
          %s305 = sshll.u32 %s8, 4
          %s306 = int_to_ptr.vmem [resolvable:$true] %s305
          %308 = dma.vmem_to_smem %s306, 16, [#allocation7], [#allocation8]
        $region44: #{multi_scale_conv_forward.1} parent=11 // pred_fallthru
          _
      $region12: #{multi_scale_conv_forward.1} parent=5 // pred_fallthru
        _
      %p309 = scmp.lt.s32.totalorder %s18, 2
      // Predicated region
      $region45: #{multi_scale_conv_forward.1} parent=5 // pred_check
        %p310 = pneg %p309
      $region46: #{multi_scale_conv_forward.1} parent=5 // pred_check_branch
        %312 = sbr.rel (%p310) target = $region48
      $region47: #{multi_scale_conv_forward.1} parent=5 // pred_region
        // Predicated region
        $region49: #{multi_scale_conv_forward.1} parent=47 // pred_check
          %p313 = pneg %p38
        $region50: #{multi_scale_conv_forward.1} parent=47 // pred_check_branch
          %315 = sbr.rel (%p313) target = $region52
        $region51: #{multi_scale_conv_forward.1} parent=47 // pred_region
          %p316 = scmp.lt.s32.totalorder %s18, 1
          %s317 = scalar_select %p316, %s18, 1
          %s318 = smul.addr %s317, 2
          %s319 = smul.addr %s318, 4
          %s320 = scalar_lea.vmem %s0, %s319
        $region52: #{multi_scale_conv_forward.1} parent=47 // pred_fallthru
          _
      $region48: #{multi_scale_conv_forward.1} parent=5 // pred_fallthru
        _
      %p321 = scmp.le.s32.totalorder 1, %s18
      %p322 = scmp.lt.s32.totalorder %s18, 3
      %p323 = pnand %p321, %p322
      %p324 = pneg %p323
      // Predicated region
      $region53: #{multi_scale_conv_forward.1} parent=5 // pred_check
        _
      $region54: #{multi_scale_conv_forward.1} parent=5 // pred_check_branch
        %326 = sbr.rel (%p323) target = $region56
      $region55: #{multi_scale_conv_forward.1} parent=5 // pred_region
        %s327 = ssub.s32 %s18, 1
        // Predicated region
        $region57: #{multi_scale_conv_forward.1} parent=55 // pred_check
          %p328 = pneg %p86
        $region58: #{multi_scale_conv_forward.1} parent=55 // pred_check_branch
          %330 = sbr.rel (%p328) target = $region60
        $region59: #{multi_scale_conv_forward.1} parent=55 // pred_region
          %331 = dma.done [#allocation3], 16
        $region60: #{multi_scale_conv_forward.1} parent=55 // pred_fallthru
          _
        // Predicated region
        $region61: #{multi_scale_conv_forward.1} parent=55 // pred_check
          %p332 = pneg %p128
        $region62: #{multi_scale_conv_forward.1} parent=55 // pred_check_branch
          %334 = sbr.rel (%p332) target = $region64
        $region63: #{multi_scale_conv_forward.1} parent=55 // pred_region
          %335 = dma.done [#allocation5], 16
        $region64: #{multi_scale_conv_forward.1} parent=55 // pred_fallthru
          _
        // Predicated region
        $region65: #{multi_scale_conv_forward.1} parent=55 // pred_check
          %p336 = pneg %p170
        $region66: #{multi_scale_conv_forward.1} parent=55 // pred_check_branch
          %338 = sbr.rel (%p336) target = $region68
        $region67: #{multi_scale_conv_forward.1} parent=55 // pred_region
          %339 = dma.done [#allocation5], 16
        $region68: #{multi_scale_conv_forward.1} parent=55 // pred_fallthru
          _
        // Predicated region
        $region69: #{multi_scale_conv_forward.1} parent=55 // pred_check
          %p340 = pneg %p212
        $region70: #{multi_scale_conv_forward.1} parent=55 // pred_check_branch
          %342 = sbr.rel (%p340) target = $region72
        $region71: #{multi_scale_conv_forward.1} parent=55 // pred_region
          %343 = dma.done [#allocation8], 16
        $region72: #{multi_scale_conv_forward.1} parent=55 // pred_fallthru
          _
        %344 = sfence
        %p345 = scmp.lt.s32.totalorder %s23, 1
        %s346 = scalar_select %p345, %s23, 1
        %s347 = smul.addr %s346, 2
        %s348 = smul.addr %s347, 4
        %s349 = scalar_lea.vmem %s0, %s348
        %p350 = pneg %p44
        %p351 = pneg %p41
        %p352 = pneg %p65
        %p353 = pneg %p62
        %p354 = pneg %p86
        %p355 = pneg %p83
        %p356 = pneg %p107
        %p357 = pneg %p104
        %p358 = pneg %p128
        %p359 = pneg %p125
        %p360 = pneg %p149
        %p361 = pneg %p146
        %p362 = pneg %p170
        %p363 = pneg %p167
        %p364 = pneg %p191
        %p365 = pneg %p188
        %p366 = pneg %p212
        %p367 = pneg %p209
        %p368 = pneg %p238
        %p369 = pneg %p235
        %p370 = scmp.lt.s32.totalorder %s23, 1
        %s371 = scalar_select %p370, %s23, 1
        %s372 = smul.addr %s371, 2
        %s373 = smul.addr %s372, 8
        %s374 = scalar_lea.vmem %s9, %s373
        %p375 = scmp.lt.s32.totalorder %s23, 1
        %s376 = scalar_select %p375, %s23, 1
        %s377 = smul.addr %s376, 2
        %s378 = smul.addr %s377, 4
        %s379 = scalar_lea.vmem %s0, %s378
        %p380 = scmp.lt.s32.totalorder %s23, 1
        %s381 = scalar_select %p380, %s23, 1
        %s382 = smul.addr %s381, 2
        %s383 = smul.addr %s382, 8
        %s384 = scalar_lea.vmem %s9, %s383
        %v385 = vlaneseq
        %v386 = vand.u32 %v385, 127
        %v387 = vadd.s32 %v386, 128
        %v388 = vand.u32 %v386, 15
        %v389 = vand.u32 %v387, 15
        %vm390 = vcmp.ge.s32.totalorder %v386, 32
        %vm391 = vcmp.ge.s32.totalorder %v387, 32
        %vm392 = vcmp.lt.s32.totalorder %v386, 288
        %vm393 = vcmp.lt.s32.totalorder %v387, 288
        %vm394 = vmand %vm390, %vm392
        %vm395 = vmand %vm391, %vm393
        %vm396 = vcmp.ge.s32.totalorder %v388, 2
        %vm397 = vcmp.ge.s32.totalorder %v389, 2
        %vm398 = vcmp.lt.s32.totalorder %v388, 18
        %vm399 = vcmp.lt.s32.totalorder %v389, 18
        %vm400 = vmand %vm396, %vm398
        %vm401 = vmand %vm397, %vm399
        %vm402 = vcmp.ge.s32.totalorder %v386, 16
        %vm403 = vcmp.ge.s32.totalorder %v387, 16
        %vm404 = vcmp.lt.s32.totalorder %v386, 272
        %vm405 = vcmp.lt.s32.totalorder %v387, 272
        %vm406 = vmand %vm402, %vm404
        %vm407 = vmand %vm403, %vm405
        %vm408 = vcmp.ge.s32.totalorder %v388, 1
        %vm409 = vcmp.ge.s32.totalorder %v389, 1
        %vm410 = vcmp.lt.s32.totalorder %v388, 17
        %vm411 = vcmp.lt.s32.totalorder %v389, 17
        %vm412 = vmand %vm408, %vm410
        %vm413 = vmand %vm409, %vm411
        %vm414 = vcmp.ge.s32.totalorder %v386, 4294967280
        %vm415 = vcmp.ge.s32.totalorder %v387, 4294967280
        %vm416 = vcmp.lt.s32.totalorder %v386, 240
        %vm417 = vcmp.lt.s32.totalorder %v387, 240
        %vm418 = vmand %vm414, %vm416
        %vm419 = vmand %vm415, %vm417
        %vm420 = vcmp.ge.s32.totalorder %v388, 4294967295
        %vm421 = vcmp.ge.s32.totalorder %v389, 4294967295
        %vm422 = vcmp.lt.s32.totalorder %v388, 15
        %vm423 = vcmp.lt.s32.totalorder %v389, 15
        %vm424 = vmand %vm420, %vm422
        %vm425 = vmand %vm421, %vm423
        %vm426 = vcmp.ge.s32.totalorder %v386, 4294967264
        %vm427 = vcmp.ge.s32.totalorder %v387, 4294967264
        %vm428 = vcmp.lt.s32.totalorder %v386, 224
        %vm429 = vcmp.lt.s32.totalorder %v387, 224
        %vm430 = vmand %vm426, %vm428
        %vm431 = vmand %vm427, %vm429
        %vm432 = vcmp.ge.s32.totalorder %v388, 4294967294
        %vm433 = vcmp.ge.s32.totalorder %v389, 4294967294
        %vm434 = vcmp.lt.s32.totalorder %v388, 14
        %vm435 = vcmp.lt.s32.totalorder %v389, 14
        %vm436 = vmand %vm432, %vm434
        %vm437 = vmand %vm433, %vm435
        %v438 = vld [vmem:[%s379] sm:$0xff]
        %v439 = vld [vmem:[%s1] sm:$0xf]
        %441 = vset.pattern.permute.xlu0 0
        %442 = vperm.xlu0 %441, %v439
        %v443 = vpop.permute.xlu0 %442
        %v446 = vcombine.high %v438, %v438
        %v448 = vmul.f32 %v443, %v438
        %v449 = vmul.f32 %v443, %v446
        %v450 = vld [vmem:[%s1] sm:$0xf]
        %452 = vset.pattern.permute.xlu0 1
        %453 = vperm.xlu0 %452, %v450
        %v454 = vpop.permute.xlu0 %453
        %v456 = vmul.f32 %v454, %v438
        %v457 = vmul.f32 %v454, %v446
        %vm458 = vcmask 1043456
        %v459 = vsel %vm458, %v448, 0.0
        %v460 = vrot.slane %v459, 4
        %v461 = vadd.f32 %v459, %v460
        %v462 = vrot.slane %v461, 2
        %v463 = vadd.f32 %v461, %v462
        %v464 = vrot.slane %v463, 1
        %v465 = vadd.f32 %v463, %v464
        %v466 = vsel %vm458, %v449, 0.0
        %v467 = vrot.slane %v466, 4
        %v468 = vadd.f32 %v466, %v467
        %v469 = vrot.slane %v468, 2
        %v470 = vadd.f32 %v468, %v469
        %v471 = vrot.slane %v470, 1
        %v472 = vadd.f32 %v470, %v471
        %s473 = sld [smem:[#allocation2]]
        %v474 = vstv %s473
        %v475 = vadd.f32 %v465, %v474
        %v476 = vadd.f32 %v472, %v474
        %v477 = vmax.f32 %v475, 0.0
        %v478 = vmax.f32 %v476, 0.0
        %v479 = vsel %vm458, %v456, 0.0
        %v480 = vrot.slane %v479, 4
        %v481 = vadd.f32 %v479, %v480
        %v482 = vrot.slane %v481, 2
        %v483 = vadd.f32 %v481, %v482
        %v484 = vrot.slane %v483, 1
        %v485 = vadd.f32 %v483, %v484
        %v486 = vsel %vm458, %v457, 0.0
        %v487 = vrot.slane %v486, 4
        %v488 = vadd.f32 %v486, %v487
        %v489 = vrot.slane %v488, 2
        %v490 = vadd.f32 %v488, %v489
        %v491 = vrot.slane %v490, 1
        %v492 = vadd.f32 %v490, %v491
        %s493 = sld [smem:[#allocation2 + $0x1]]
        %v494 = vstv %s493
        %v495 = vadd.f32 %v485, %v494
        %v496 = vadd.f32 %v492, %v494
        %v497 = vmax.f32 %v495, 0.0
        %v498 = vmax.f32 %v496, 0.0
        %v499 = vsel %vm458, %v438, %v477
        %v500 = vsel %vm458, %v446, %v478
        %vm501 = vcmask 1044480
        %v502 = vsel %vm501, %v499, %v497
        %v503 = vsel %vm501, %v500, %v498
        %504 = vrot.lane.b32.xlu0 %v502, 17
        %v505 = vpop.permute.xlu0 %504
        %506 = vrot.lane.b32.xlu0 %v503, 17
        %v507 = vpop.permute.xlu0 %506
        %vm508 = vcmp.lt.s32.totalorder %v386, 17
        %v509 = vsel %vm508, %v505, %v507
        %v510 = vsel %vm508, %v507, %v505
        %vm511 = vmand %vm406, %vm412
        %vm512 = vmand %vm407, %vm413
        %v513 = vsel %vm511, 1, 0
        %v514 = vsel %vm512, 1, 0
        %vm515 = vcmp.eq.s32.totalorder %v513, 1
        %vm516 = vcmp.eq.s32.totalorder %v514, 1
        %v517 = vsel %vm515, %v510, 0.0
        %v518 = vsel %vm516, %v509, 0.0
        %v519 = vld [vmem:[%s3] sm:$0x3f]
        %521 = vset.pattern.permute.xlu0 0
        %522 = vperm.xlu0 %521, %v519
        %v523 = vpop.permute.xlu0 %522
        %v525 = vmul.f32 %v523, %v517
        %v526 = vmul.f32 %v523, %v518
        %527 = vset.pattern.permute.xlu0 9
        %528 = vperm.xlu0 %527, %v519
        %v529 = vpop.permute.xlu0 %528
        %v531 = vmul.f32 %v529, %v517
        %v532 = vmul.f32 %v529, %v518
        %533 = vrot.lane.b32.xlu0 %v502, 16
        %v534 = vpop.permute.xlu0 %533
        %535 = vrot.lane.b32.xlu0 %v503, 16
        %v536 = vpop.permute.xlu0 %535
        %vm537 = vcmp.lt.s32.totalorder %v386, 16
        %v538 = vsel %vm537, %v534, %v536
        %v539 = vsel %vm537, %v536, %v534
        %v540 = vsel %vm406, 1, 0
        %v541 = vsel %vm407, 1, 0
        %vm542 = vcmp.eq.s32.totalorder %v540, 1
        %vm543 = vcmp.eq.s32.totalorder %v541, 1
        %v544 = vsel %vm542, %v539, 0.0
        %v545 = vsel %vm543, %v538, 0.0
        %546 = vset.pattern.permute.xlu0 1
        %547 = vperm.xlu0 %546, %v519
        %v548 = vpop.permute.xlu0 %547
        %v550 = vmul.f32 %v548, %v544
        %v551 = vmul.f32 %v548, %v545
        %552 = vset.pattern.permute.xlu0 10
        %553 = vperm.xlu0 %552, %v519
        %v554 = vpop.permute.xlu0 %553
        %v556 = vmul.f32 %v554, %v544
        %v557 = vmul.f32 %v554, %v545
        %558 = vrot.lane.b32.xlu0 %v502, 15
        %v559 = vpop.permute.xlu0 %558
        %560 = vrot.lane.b32.xlu0 %v503, 15
        %v561 = vpop.permute.xlu0 %560
        %vm562 = vcmp.lt.s32.totalorder %v386, 15
        %v563 = vsel %vm562, %v559, %v561
        %v564 = vsel %vm562, %v561, %v559
        %vm565 = vmand %vm406, %vm424
        %vm566 = vmand %vm407, %vm425
        %v567 = vsel %vm565, 1, 0
        %v568 = vsel %vm566, 1, 0
        %vm569 = vcmp.eq.s32.totalorder %v567, 1
        %vm570 = vcmp.eq.s32.totalorder %v568, 1
        %v571 = vsel %vm569, %v564, 0.0
        %v572 = vsel %vm570, %v563, 0.0
        %573 = vset.pattern.permute.xlu0 2
        %574 = vperm.xlu0 %573, %v519
        %v575 = vpop.permute.xlu0 %574
        %v577 = vmul.f32 %v575, %v571
        %v578 = vmul.f32 %v575, %v572
        %v579 = vadd.f32 %v525, %v577
        %v580 = vadd.f32 %v526, %v578
        %581 = vset.pattern.permute.xlu0 11
        %582 = vperm.xlu0 %581, %v519
        %v583 = vpop.permute.xlu0 %582
        %v585 = vmul.f32 %v583, %v571
        %v586 = vmul.f32 %v583, %v572
        %v587 = vadd.f32 %v531, %v585
        %v588 = vadd.f32 %v532, %v586
        %589 = vrot.lane.b32.xlu0 %v502, 1
        %v590 = vpop.permute.xlu0 %589
        %591 = vrot.lane.b32.xlu0 %v503, 1
        %v592 = vpop.permute.xlu0 %591
        %vm593 = vcmp.lt.s32.totalorder %v386, 1
        %v594 = vsel %vm593, %v590, %v592
        %v595 = vsel %vm593, %v592, %v590
        %v596 = vsel %vm412, 1, 0
        %v597 = vsel %vm413, 1, 0
        %vm598 = vcmp.eq.s32.totalorder %v596, 1
        %vm599 = vcmp.eq.s32.totalorder %v597, 1
        %v600 = vsel %vm598, %v595, 0.0
        %v601 = vsel %vm599, %v594, 0.0
        %602 = vset.pattern.permute.xlu0 3
        %603 = vperm.xlu0 %602, %v519
        %v604 = vpop.permute.xlu0 %603
        %v606 = vmul.f32 %v604, %v600
        %v607 = vmul.f32 %v604, %v601
        %v608 = vadd.f32 %v550, %v606
        %v609 = vadd.f32 %v551, %v607
        %610 = vset.pattern.permute.xlu0 12
        %611 = vperm.xlu0 %610, %v519
        %v612 = vpop.permute.xlu0 %611
        %v614 = vmul.f32 %v612, %v600
        %v615 = vmul.f32 %v612, %v601
        %v616 = vadd.f32 %v556, %v614
        %v617 = vadd.f32 %v557, %v615
        %618 = vset.pattern.permute.xlu0 4
        %619 = vperm.xlu0 %618, %v519
        %v620 = vpop.permute.xlu0 %619
        %v622 = vmul.f32 %v620, %v502
        %v623 = vmul.f32 %v620, %v503
        %v624 = vadd.f32 %v579, %v622
        %v625 = vadd.f32 %v580, %v623
        %626 = vset.pattern.permute.xlu0 13
        %627 = vperm.xlu0 %626, %v519
        %v628 = vpop.permute.xlu0 %627
        %v630 = vmul.f32 %v628, %v502
        %v631 = vmul.f32 %v628, %v503
        %v632 = vadd.f32 %v587, %v630
        %v633 = vadd.f32 %v588, %v631
        %634 = vrot.lane.b32.xlu0 %v502, 127
        %v635 = vpop.permute.xlu0 %634
        %636 = vrot.lane.b32.xlu0 %v503, 127
        %v637 = vpop.permute.xlu0 %636
        %vm638 = vcmp.lt.s32.totalorder %v386, 127
        %v639 = vsel %vm638, %v635, %v637
        %v640 = vsel %vm638, %v637, %v635
        %v641 = vsel %vm424, 1, 0
        %v642 = vsel %vm425, 1, 0
        %vm643 = vcmp.eq.s32.totalorder %v641, 1
        %vm644 = vcmp.eq.s32.totalorder %v642, 1
        %v645 = vsel %vm643, %v639, 0.0
        %v646 = vsel %vm644, %v640, 0.0
        %647 = vset.pattern.permute.xlu0 5
        %648 = vperm.xlu0 %647, %v519
        %v649 = vpop.permute.xlu0 %648
        %v651 = vmul.f32 %v649, %v645
        %v652 = vmul.f32 %v649, %v646
        %v653 = vadd.f32 %v608, %v651
        %v654 = vadd.f32 %v609, %v652
        %655 = vset.pattern.permute.xlu0 14
        %656 = vperm.xlu0 %655, %v519
        %v657 = vpop.permute.xlu0 %656
        %v659 = vmul.f32 %v657, %v645
        %v660 = vmul.f32 %v657, %v646
        %v661 = vadd.f32 %v616, %v659
        %v662 = vadd.f32 %v617, %v660
        %663 = vrot.lane.b32.xlu0 %v502, 113
        %v664 = vpop.permute.xlu0 %663
        %665 = vrot.lane.b32.xlu0 %v503, 113
        %v666 = vpop.permute.xlu0 %665
        %vm667 = vcmp.lt.s32.totalorder %v386, 113
        %v668 = vsel %vm667, %v664, %v666
        %v669 = vsel %vm667, %v666, %v664
        %vm670 = vmand %vm418, %vm412
        %vm671 = vmand %vm419, %vm413
        %v672 = vsel %vm670, 1, 0
        %v673 = vsel %vm671, 1, 0
        %vm674 = vcmp.eq.s32.totalorder %v672, 1
        %vm675 = vcmp.eq.s32.totalorder %v673, 1
        %v676 = vsel %vm674, %v668, 0.0
        %v677 = vsel %vm675, %v669, 0.0
        %678 = vset.pattern.permute.xlu0 6
        %679 = vperm.xlu0 %678, %v519
        %v680 = vpop.permute.xlu0 %679
        %v682 = vmul.f32 %v680, %v676
        %v683 = vmul.f32 %v680, %v677
        %v684 = vadd.f32 %v624, %v682
        %v685 = vadd.f32 %v625, %v683
        %686 = vset.pattern.permute.xlu0 15
        %687 = vperm.xlu0 %686, %v519
        %v688 = vpop.permute.xlu0 %687
        %v690 = vmul.f32 %v688, %v676
        %v691 = vmul.f32 %v688, %v677
        %v692 = vadd.f32 %v632, %v690
        %v693 = vadd.f32 %v633, %v691
        %694 = vrot.lane.b32.xlu0 %v502, 112
        %v695 = vpop.permute.xlu0 %694
        %696 = vrot.lane.b32.xlu0 %v503, 112
        %v697 = vpop.permute.xlu0 %696
        %vm698 = vcmp.lt.s32.totalorder %v386, 112
        %v699 = vsel %vm698, %v695, %v697
        %v700 = vsel %vm698, %v697, %v695
        %v701 = vsel %vm418, 1, 0
        %v702 = vsel %vm419, 1, 0
        %vm703 = vcmp.eq.s32.totalorder %v701, 1
        %vm704 = vcmp.eq.s32.totalorder %v702, 1
        %v705 = vsel %vm703, %v699, 0.0
        %v706 = vsel %vm704, %v700, 0.0
        %707 = vset.pattern.permute.xlu0 7
        %708 = vperm.xlu0 %707, %v519
        %v709 = vpop.permute.xlu0 %708
        %v711 = vmul.f32 %v709, %v705
        %v712 = vmul.f32 %v709, %v706
        %v713 = vadd.f32 %v653, %v711
        %v714 = vadd.f32 %v654, %v712
        %715 = vset.pattern.permute.xlu0 16
        %716 = vperm.xlu0 %715, %v519
        %v717 = vpop.permute.xlu0 %716
        %v719 = vmul.f32 %v717, %v705
        %v720 = vmul.f32 %v717, %v706
        %v721 = vadd.f32 %v661, %v719
        %v722 = vadd.f32 %v662, %v720
        %723 = vrot.lane.b32.xlu0 %v502, 111
        %v724 = vpop.permute.xlu0 %723
        %725 = vrot.lane.b32.xlu0 %v503, 111
        %v726 = vpop.permute.xlu0 %725
        %vm727 = vcmp.lt.s32.totalorder %v386, 111
        %v728 = vsel %vm727, %v724, %v726
        %v729 = vsel %vm727, %v726, %v724
        %vm730 = vmand %vm418, %vm424
        %vm731 = vmand %vm419, %vm425
        %v732 = vsel %vm730, 1, 0
        %v733 = vsel %vm731, 1, 0
        %vm734 = vcmp.eq.s32.totalorder %v732, 1
        %vm735 = vcmp.eq.s32.totalorder %v733, 1
        %v736 = vsel %vm734, %v728, 0.0
        %v737 = vsel %vm735, %v729, 0.0
        %738 = vset.pattern.permute.xlu0 8
        %739 = vperm.xlu0 %738, %v519
        %v740 = vpop.permute.xlu0 %739
        %v742 = vmul.f32 %v740, %v736
        %v743 = vmul.f32 %v740, %v737
        %v744 = vadd.f32 %v684, %v742
        %v745 = vadd.f32 %v685, %v743
        %746 = vset.pattern.permute.xlu0 17
        %747 = vperm.xlu0 %746, %v519
        %v748 = vpop.permute.xlu0 %747
        %v750 = vmul.f32 %v748, %v736
        %v751 = vmul.f32 %v748, %v737
        %v752 = vadd.f32 %v692, %v750
        %v753 = vadd.f32 %v693, %v751
        %v754 = vadd.f32 %v744, %v713
        %v755 = vadd.f32 %v745, %v714
        %vm756 = vcmask 1045504
        %v757 = vsel %vm756, %v754, 0.0
        %v758 = vrot.slane %v757, 4
        %v759 = vadd.f32 %v757, %v758
        %v760 = vrot.slane %v759, 2
        %v761 = vadd.f32 %v759, %v760
        %v762 = vrot.slane %v761, 1
        %v763 = vadd.f32 %v761, %v762
        %v764 = vsel %vm756, %v755, 0.0
        %v765 = vrot.slane %v764, 4
        %v766 = vadd.f32 %v764, %v765
        %v767 = vrot.slane %v766, 2
        %v768 = vadd.f32 %v766, %v767
        %v769 = vrot.slane %v768, 1
        %v770 = vadd.f32 %v768, %v769
        %s771 = sld [smem:[#allocation4]]
        %v772 = vstv %s771
        %v773 = vadd.f32 %v763, %v772
        %v774 = vadd.f32 %v770, %v772
        %v775 = vmax.f32 %v773, 0.0
        %v776 = vmax.f32 %v774, 0.0
        %v777 = vadd.f32 %v752, %v721
        %v778 = vadd.f32 %v753, %v722
        %v779 = vsel %vm756, %v777, 0.0
        %v780 = vrot.slane %v779, 4
        %v781 = vadd.f32 %v779, %v780
        %v782 = vrot.slane %v781, 2
        %v783 = vadd.f32 %v781, %v782
        %v784 = vrot.slane %v783, 1
        %v785 = vadd.f32 %v783, %v784
        %v786 = vsel %vm756, %v778, 0.0
        %v787 = vrot.slane %v786, 4
        %v788 = vadd.f32 %v786, %v787
        %v789 = vrot.slane %v788, 2
        %v790 = vadd.f32 %v788, %v789
        %v791 = vrot.slane %v790, 1
        %v792 = vadd.f32 %v790, %v791
        %s793 = sld [smem:[#allocation4 + $0x1]]
        %v794 = vstv %s793
        %v795 = vadd.f32 %v785, %v794
        %v796 = vadd.f32 %v792, %v794
        %v797 = vmax.f32 %v795, 0.0
        %v798 = vmax.f32 %v796, 0.0
        %v799 = vsel %vm756, %v502, %v775
        %v800 = vsel %vm756, %v503, %v776
        %vm801 = vcmask 1046528
        %v802 = vsel %vm801, %v799, %v797
        %v803 = vsel %vm801, %v800, %v798
        %804 = vrot.lane.b32.xlu0 %v802, 34
        %v805 = vpop.permute.xlu0 %804
        %806 = vrot.lane.b32.xlu0 %v803, 34
        %v807 = vpop.permute.xlu0 %806
        %vm808 = vcmp.lt.s32.totalorder %v386, 34
        %v809 = vsel %vm808, %v805, %v807
        %v810 = vsel %vm808, %v807, %v805
        %vm811 = vmand %vm394, %vm400
        %vm812 = vmand %vm395, %vm401
        %v813 = vsel %vm811, 1, 0
        %v814 = vsel %vm812, 1, 0
        %vm815 = vcmp.eq.s32.totalorder %v813, 1
        %vm816 = vcmp.eq.s32.totalorder %v814, 1
        %v817 = vsel %vm815, %v810, 0.0
        %v818 = vsel %vm816, %v809, 0.0
        %v819 = vld [vmem:[%s5] sm:$0xff]
        %821 = vset.pattern.permute.xlu0 0
        %822 = vperm.xlu0 %821, %v819
        %v823 = vpop.permute.xlu0 %822
        %v825 = vmul.f32 %v823, %v817
        %v826 = vmul.f32 %v823, %v818
        %827 = vset.pattern.permute.xlu0 25
        %828 = vperm.xlu0 %827, %v819
        %v829 = vpop.permute.xlu0 %828
        %v831 = vmul.f32 %v829, %v817
        %v832 = vmul.f32 %v829, %v818
        %833 = vrot.lane.b32.xlu0 %v802, 33
        %v834 = vpop.permute.xlu0 %833
        %835 = vrot.lane.b32.xlu0 %v803, 33
        %v836 = vpop.permute.xlu0 %835
        %vm837 = vcmp.lt.s32.totalorder %v386, 33
        %v838 = vsel %vm837, %v834, %v836
        %v839 = vsel %vm837, %v836, %v834
        %vm840 = vmand %vm394, %vm412
        %vm841 = vmand %vm395, %vm413
        %v842 = vsel %vm840, 1, 0
        %v843 = vsel %vm841, 1, 0
        %vm844 = vcmp.eq.s32.totalorder %v842, 1
        %vm845 = vcmp.eq.s32.totalorder %v843, 1
        %v846 = vsel %vm844, %v839, 0.0
        %v847 = vsel %vm845, %v838, 0.0
        %848 = vset.pattern.permute.xlu0 1
        %849 = vperm.xlu0 %848, %v819
        %v850 = vpop.permute.xlu0 %849
        %v852 = vmul.f32 %v850, %v846
        %v853 = vmul.f32 %v850, %v847
        %854 = vset.pattern.permute.xlu0 26
        %855 = vperm.xlu0 %854, %v819
        %v856 = vpop.permute.xlu0 %855
        %v858 = vmul.f32 %v856, %v846
        %v859 = vmul.f32 %v856, %v847
        %860 = vrot.lane.b32.xlu0 %v802, 32
        %v861 = vpop.permute.xlu0 %860
        %862 = vrot.lane.b32.xlu0 %v803, 32
        %v863 = vpop.permute.xlu0 %862
        %vm864 = vcmp.lt.s32.totalorder %v386, 32
        %v865 = vsel %vm864, %v861, %v863
        %v866 = vsel %vm864, %v863, %v861
        %v867 = vsel %vm394, 1, 0
        %v868 = vsel %vm395, 1, 0
        %vm869 = vcmp.eq.s32.totalorder %v867, 1
        %vm870 = vcmp.eq.s32.totalorder %v868, 1
        %v871 = vsel %vm869, %v866, 0.0
        %v872 = vsel %vm870, %v865, 0.0
        %873 = vset.pattern.permute.xlu0 2
        %874 = vperm.xlu0 %873, %v819
        %v875 = vpop.permute.xlu0 %874
        %v877 = vmul.f32 %v875, %v871
        %v878 = vmul.f32 %v875, %v872
        %v879 = vadd.f32 %v825, %v877
        %v880 = vadd.f32 %v826, %v878
        %881 = vset.pattern.permute.xlu0 27
        %882 = vperm.xlu0 %881, %v819
        %v883 = vpop.permute.xlu0 %882
        %v885 = vmul.f32 %v883, %v871
        %v886 = vmul.f32 %v883, %v872
        %v887 = vadd.f32 %v831, %v885
        %v888 = vadd.f32 %v832, %v886
        %889 = vrot.lane.b32.xlu0 %v802, 31
        %v890 = vpop.permute.xlu0 %889
        %891 = vrot.lane.b32.xlu0 %v803, 31
        %v892 = vpop.permute.xlu0 %891
        %vm893 = vcmp.lt.s32.totalorder %v386, 31
        %v894 = vsel %vm893, %v890, %v892
        %v895 = vsel %vm893, %v892, %v890
        %vm896 = vmand %vm394, %vm424
        %vm897 = vmand %vm395, %vm425
        %v898 = vsel %vm896, 1, 0
        %v899 = vsel %vm897, 1, 0
        %vm900 = vcmp.eq.s32.totalorder %v898, 1
        %vm901 = vcmp.eq.s32.totalorder %v899, 1
        %v902 = vsel %vm900, %v895, 0.0
        %v903 = vsel %vm901, %v894, 0.0
        %904 = vset.pattern.permute.xlu0 3
        %905 = vperm.xlu0 %904, %v819
        %v906 = vpop.permute.xlu0 %905
        %v908 = vmul.f32 %v906, %v902
        %v909 = vmul.f32 %v906, %v903
        %v910 = vadd.f32 %v852, %v908
        %v911 = vadd.f32 %v853, %v909
        %912 = vset.pattern.permute.xlu0 28
        %913 = vperm.xlu0 %912, %v819
        %v914 = vpop.permute.xlu0 %913
        %v916 = vmul.f32 %v914, %v902
        %v917 = vmul.f32 %v914, %v903
        %v918 = vadd.f32 %v858, %v916
        %v919 = vadd.f32 %v859, %v917
        %920 = vrot.lane.b32.xlu0 %v802, 30
        %v921 = vpop.permute.xlu0 %920
        %922 = vrot.lane.b32.xlu0 %v803, 30
        %v923 = vpop.permute.xlu0 %922
        %vm924 = vcmp.lt.s32.totalorder %v386, 30
        %v925 = vsel %vm924, %v921, %v923
        %v926 = vsel %vm924, %v923, %v921
        %vm927 = vmand %vm394, %vm436
        %vm928 = vmand %vm395, %vm437
        %v929 = vsel %vm927, 1, 0
        %v930 = vsel %vm928, 1, 0
        %vm931 = vcmp.eq.s32.totalorder %v929, 1
        %vm932 = vcmp.eq.s32.totalorder %v930, 1
        %v933 = vsel %vm931, %v926, 0.0
        %v934 = vsel %vm932, %v925, 0.0
        %935 = vset.pattern.permute.xlu0 4
        %936 = vperm.xlu0 %935, %v819
        %v937 = vpop.permute.xlu0 %936
        %v939 = vmul.f32 %v937, %v933
        %v940 = vmul.f32 %v937, %v934
        %v941 = vadd.f32 %v879, %v939
        %v942 = vadd.f32 %v880, %v940
        %943 = vset.pattern.permute.xlu0 29
        %944 = vperm.xlu0 %943, %v819
        %v945 = vpop.permute.xlu0 %944
        %v947 = vmul.f32 %v945, %v933
        %v948 = vmul.f32 %v945, %v934
        %v949 = vadd.f32 %v887, %v947
        %v950 = vadd.f32 %v888, %v948
        %951 = vrot.lane.b32.xlu0 %v802, 18
        %v952 = vpop.permute.xlu0 %951
        %953 = vrot.lane.b32.xlu0 %v803, 18
        %v954 = vpop.permute.xlu0 %953
        %vm955 = vcmp.lt.s32.totalorder %v386, 18
        %v956 = vsel %vm955, %v952, %v954
        %v957 = vsel %vm955, %v954, %v952
        %vm958 = vmand %vm406, %vm400
        %vm959 = vmand %vm407, %vm401
        %v960 = vsel %vm958, 1, 0
        %v961 = vsel %vm959, 1, 0
        %vm962 = vcmp.eq.s32.totalorder %v960, 1
        %vm963 = vcmp.eq.s32.totalorder %v961, 1
        %v964 = vsel %vm962, %v957, 0.0
        %v965 = vsel %vm963, %v956, 0.0
        %966 = vset.pattern.permute.xlu0 5
        %967 = vperm.xlu0 %966, %v819
        %v968 = vpop.permute.xlu0 %967
        %v970 = vmul.f32 %v968, %v964
        %v971 = vmul.f32 %v968, %v965
        %v972 = vadd.f32 %v910, %v970
        %v973 = vadd.f32 %v911, %v971
        %974 = vset.pattern.permute.xlu0 30
        %975 = vperm.xlu0 %974, %v819
        %v976 = vpop.permute.xlu0 %975
        %v978 = vmul.f32 %v976, %v964
        %v979 = vmul.f32 %v976, %v965
        %v980 = vadd.f32 %v918, %v978
        %v981 = vadd.f32 %v919, %v979
        %982 = vrot.lane.b32.xlu0 %v802, 17
        %v983 = vpop.permute.xlu0 %982
        %984 = vrot.lane.b32.xlu0 %v803, 17
        %v985 = vpop.permute.xlu0 %984
        %v986 = vsel %vm508, %v983, %v985
        %v987 = vsel %vm508, %v985, %v983
        %v988 = vsel %vm515, %v987, 0.0
        %v989 = vsel %vm516, %v986, 0.0
        %990 = vset.pattern.permute.xlu0 6
        %991 = vperm.xlu0 %990, %v819
        %v992 = vpop.permute.xlu0 %991
        %v994 = vmul.f32 %v992, %v988
        %v995 = vmul.f32 %v992, %v989
        %v996 = vadd.f32 %v941, %v994
        %v997 = vadd.f32 %v942, %v995
        %998 = vset.pattern.permute.xlu0 31
        %999 = vperm.xlu0 %998, %v819
        %v1000 = vpop.permute.xlu0 %999
        %v1002 = vmul.f32 %v1000, %v988
        %v1003 = vmul.f32 %v1000, %v989
        %v1004 = vadd.f32 %v949, %v1002
        %v1005 = vadd.f32 %v950, %v1003
        %1006 = vrot.lane.b32.xlu0 %v802, 16
        %v1007 = vpop.permute.xlu0 %1006
        %1008 = vrot.lane.b32.xlu0 %v803, 16
        %v1009 = vpop.permute.xlu0 %1008
        %v1010 = vsel %vm537, %v1007, %v1009
        %v1011 = vsel %vm537, %v1009, %v1007
        %v1012 = vsel %vm542, %v1011, 0.0
        %v1013 = vsel %vm543, %v1010, 0.0
        %1014 = vset.pattern.permute.xlu0 7
        %1015 = vperm.xlu0 %1014, %v819
        %v1016 = vpop.permute.xlu0 %1015
        %v1018 = vmul.f32 %v1016, %v1012
        %v1019 = vmul.f32 %v1016, %v1013
        %v1020 = vadd.f32 %v972, %v1018
        %v1021 = vadd.f32 %v973, %v1019
        %1022 = vset.pattern.permute.xlu0 32
        %1023 = vperm.xlu0 %1022, %v819
        %v1024 = vpop.permute.xlu0 %1023
        %v1026 = vmul.f32 %v1024, %v1012
        %v1027 = vmul.f32 %v1024, %v1013
        %v1028 = vadd.f32 %v980, %v1026
        %v1029 = vadd.f32 %v981, %v1027
        %1030 = vrot.lane.b32.xlu0 %v802, 15
        %v1031 = vpop.permute.xlu0 %1030
        %1032 = vrot.lane.b32.xlu0 %v803, 15
        %v1033 = vpop.permute.xlu0 %1032
        %v1034 = vsel %vm562, %v1031, %v1033
        %v1035 = vsel %vm562, %v1033, %v1031
        %v1036 = vsel %vm569, %v1035, 0.0
        %v1037 = vsel %vm570, %v1034, 0.0
        %1038 = vset.pattern.permute.xlu0 8
        %1039 = vperm.xlu0 %1038, %v819
        %v1040 = vpop.permute.xlu0 %1039
        %v1042 = vmul.f32 %v1040, %v1036
        %v1043 = vmul.f32 %v1040, %v1037
        %v1044 = vadd.f32 %v996, %v1042
        %v1045 = vadd.f32 %v997, %v1043
        %1046 = vset.pattern.permute.xlu0 33
        %1047 = vperm.xlu0 %1046, %v819
        %v1048 = vpop.permute.xlu0 %1047
        %v1050 = vmul.f32 %v1048, %v1036
        %v1051 = vmul.f32 %v1048, %v1037
        %v1052 = vadd.f32 %v1004, %v1050
        %v1053 = vadd.f32 %v1005, %v1051
        %1054 = vrot.lane.b32.xlu0 %v802, 14
        %v1055 = vpop.permute.xlu0 %1054
        %1056 = vrot.lane.b32.xlu0 %v803, 14
        %v1057 = vpop.permute.xlu0 %1056
        %vm1058 = vcmp.lt.s32.totalorder %v386, 14
        %v1059 = vsel %vm1058, %v1055, %v1057
        %v1060 = vsel %vm1058, %v1057, %v1055
        %vm1061 = vmand %vm406, %vm436
        %vm1062 = vmand %vm407, %vm437
        %v1063 = vsel %vm1061, 1, 0
        %v1064 = vsel %vm1062, 1, 0
        %vm1065 = vcmp.eq.s32.totalorder %v1063, 1
        %vm1066 = vcmp.eq.s32.totalorder %v1064, 1
        %v1067 = vsel %vm1065, %v1060, 0.0
        %v1068 = vsel %vm1066, %v1059, 0.0
        %1069 = vset.pattern.permute.xlu0 9
        %1070 = vperm.xlu0 %1069, %v819
        %v1071 = vpop.permute.xlu0 %1070
        %v1073 = vmul.f32 %v1071, %v1067
        %v1074 = vmul.f32 %v1071, %v1068
        %v1075 = vadd.f32 %v1020, %v1073
        %v1076 = vadd.f32 %v1021, %v1074
        %1077 = vset.pattern.permute.xlu0 34
        %1078 = vperm.xlu0 %1077, %v819
        %v1079 = vpop.permute.xlu0 %1078
        %v1081 = vmul.f32 %v1079, %v1067
        %v1082 = vmul.f32 %v1079, %v1068
        %v1083 = vadd.f32 %v1028, %v1081
        %v1084 = vadd.f32 %v1029, %v1082
        %1085 = vrot.lane.b32.xlu0 %v802, 2
        %v1086 = vpop.permute.xlu0 %1085
        %1087 = vrot.lane.b32.xlu0 %v803, 2
        %v1088 = vpop.permute.xlu0 %1087
        %vm1089 = vcmp.lt.s32.totalorder %v386, 2
        %v1090 = vsel %vm1089, %v1086, %v1088
        %v1091 = vsel %vm1089, %v1088, %v1086
        %v1092 = vsel %vm400, 1, 0
        %v1093 = vsel %vm401, 1, 0
        %vm1094 = vcmp.eq.s32.totalorder %v1092, 1
        %vm1095 = vcmp.eq.s32.totalorder %v1093, 1
        %v1096 = vsel %vm1094, %v1091, 0.0
        %v1097 = vsel %vm1095, %v1090, 0.0
        %1098 = vset.pattern.permute.xlu0 10
        %1099 = vperm.xlu0 %1098, %v819
        %v1100 = vpop.permute.xlu0 %1099
        %v1102 = vmul.f32 %v1100, %v1096
        %v1103 = vmul.f32 %v1100, %v1097
        %v1104 = vadd.f32 %v1044, %v1102
        %v1105 = vadd.f32 %v1045, %v1103
        %1106 = vset.pattern.permute.xlu0 35
        %1107 = vperm.xlu0 %1106, %v819
        %v1108 = vpop.permute.xlu0 %1107
        %v1110 = vmul.f32 %v1108, %v1096
        %v1111 = vmul.f32 %v1108, %v1097
        %v1112 = vadd.f32 %v1052, %v1110
        %v1113 = vadd.f32 %v1053, %v1111
        %1114 = vrot.lane.b32.xlu0 %v802, 1
        %v1115 = vpop.permute.xlu0 %1114
        %1116 = vrot.lane.b32.xlu0 %v803, 1
        %v1117 = vpop.permute.xlu0 %1116
        %v1118 = vsel %vm593, %v1115, %v1117
        %v1119 = vsel %vm593, %v1117, %v1115
        %v1120 = vsel %vm598, %v1119, 0.0
        %v1121 = vsel %vm599, %v1118, 0.0
        %1122 = vset.pattern.permute.xlu0 11
        %1123 = vperm.xlu0 %1122, %v819
        %v1124 = vpop.permute.xlu0 %1123
        %v1126 = vmul.f32 %v1124, %v1120
        %v1127 = vmul.f32 %v1124, %v1121
        %v1128 = vadd.f32 %v1075, %v1126
        %v1129 = vadd.f32 %v1076, %v1127
        %1130 = vset.pattern.permute.xlu0 36
        %1131 = vperm.xlu0 %1130, %v819
        %v1132 = vpop.permute.xlu0 %1131
        %v1134 = vmul.f32 %v1132, %v1120
        %v1135 = vmul.f32 %v1132, %v1121
        %v1136 = vadd.f32 %v1083, %v1134
        %v1137 = vadd.f32 %v1084, %v1135
        %1138 = vset.pattern.permute.xlu0 12
        %1139 = vperm.xlu0 %1138, %v819
        %v1140 = vpop.permute.xlu0 %1139
        %v1142 = vmul.f32 %v1140, %v802
        %v1143 = vmul.f32 %v1140, %v803
        %v1144 = vadd.f32 %v1104, %v1142
        %v1145 = vadd.f32 %v1105, %v1143
        %1146 = vset.pattern.permute.xlu0 37
        %1147 = vperm.xlu0 %1146, %v819
        %v1148 = vpop.permute.xlu0 %1147
        %v1150 = vmul.f32 %v1148, %v802
        %v1151 = vmul.f32 %v1148, %v803
        %v1152 = vadd.f32 %v1112, %v1150
        %v1153 = vadd.f32 %v1113, %v1151
        %1154 = vrot.lane.b32.xlu0 %v802, 127
        %v1155 = vpop.permute.xlu0 %1154
        %1156 = vrot.lane.b32.xlu0 %v803, 127
        %v1157 = vpop.permute.xlu0 %1156
        %v1158 = vsel %vm638, %v1155, %v1157
        %v1159 = vsel %vm638, %v1157, %v1155
        %v1160 = vsel %vm643, %v1158, 0.0
        %v1161 = vsel %vm644, %v1159, 0.0
        %1162 = vset.pattern.permute.xlu0 13
        %1163 = vperm.xlu0 %1162, %v819
        %v1164 = vpop.permute.xlu0 %1163
        %v1166 = vmul.f32 %v1164, %v1160
        %v1167 = vmul.f32 %v1164, %v1161
        %v1168 = vadd.f32 %v1128, %v1166
        %v1169 = vadd.f32 %v1129, %v1167
        %1170 = vset.pattern.permute.xlu0 38
        %1171 = vperm.xlu0 %1170, %v819
        %v1172 = vpop.permute.xlu0 %1171
        %v1174 = vmul.f32 %v1172, %v1160
        %v1175 = vmul.f32 %v1172, %v1161
        %v1176 = vadd.f32 %v1136, %v1174
        %v1177 = vadd.f32 %v1137, %v1175
        %1178 = vrot.lane.b32.xlu0 %v802, 126
        %v1179 = vpop.permute.xlu0 %1178
        %1180 = vrot.lane.b32.xlu0 %v803, 126
        %v1181 = vpop.permute.xlu0 %1180
        %vm1182 = vcmp.lt.s32.totalorder %v386, 126
        %v1183 = vsel %vm1182, %v1179, %v1181
        %v1184 = vsel %vm1182, %v1181, %v1179
        %v1185 = vsel %vm436, 1, 0
        %v1186 = vsel %vm437, 1, 0
        %vm1187 = vcmp.eq.s32.totalorder %v1185, 1
        %vm1188 = vcmp.eq.s32.totalorder %v1186, 1
        %v1189 = vsel %vm1187, %v1183, 0.0
        %v1190 = vsel %vm1188, %v1184, 0.0
        %1191 = vset.pattern.permute.xlu0 14
        %1192 = vperm.xlu0 %1191, %v819
        %v1193 = vpop.permute.xlu0 %1192
        %v1195 = vmul.f32 %v1193, %v1189
        %v1196 = vmul.f32 %v1193, %v1190
        %v1197 = vadd.f32 %v1144, %v1195
        %v1198 = vadd.f32 %v1145, %v1196
        %1199 = vset.pattern.permute.xlu0 39
        %1200 = vperm.xlu0 %1199, %v819
        %v1201 = vpop.permute.xlu0 %1200
        %v1203 = vmul.f32 %v1201, %v1189
        %v1204 = vmul.f32 %v1201, %v1190
        %v1205 = vadd.f32 %v1152, %v1203
        %v1206 = vadd.f32 %v1153, %v1204
        %1207 = vrot.lane.b32.xlu0 %v802, 114
        %v1208 = vpop.permute.xlu0 %1207
        %1209 = vrot.lane.b32.xlu0 %v803, 114
        %v1210 = vpop.permute.xlu0 %1209
        %vm1211 = vcmp.lt.s32.totalorder %v386, 114
        %v1212 = vsel %vm1211, %v1208, %v1210
        %v1213 = vsel %vm1211, %v1210, %v1208
        %vm1214 = vmand %vm418, %vm400
        %vm1215 = vmand %vm419, %vm401
        %v1216 = vsel %vm1214, 1, 0
        %v1217 = vsel %vm1215, 1, 0
        %vm1218 = vcmp.eq.s32.totalorder %v1216, 1
        %vm1219 = vcmp.eq.s32.totalorder %v1217, 1
        %v1220 = vsel %vm1218, %v1212, 0.0
        %v1221 = vsel %vm1219, %v1213, 0.0
        %1222 = vset.pattern.permute.xlu0 15
        %1223 = vperm.xlu0 %1222, %v819
        %v1224 = vpop.permute.xlu0 %1223
        %v1226 = vmul.f32 %v1224, %v1220
        %v1227 = vmul.f32 %v1224, %v1221
        %v1228 = vadd.f32 %v1168, %v1226
        %v1229 = vadd.f32 %v1169, %v1227
        %1230 = vset.pattern.permute.xlu0 40
        %1231 = vperm.xlu0 %1230, %v819
        %v1232 = vpop.permute.xlu0 %1231
        %v1234 = vmul.f32 %v1232, %v1220
        %v1235 = vmul.f32 %v1232, %v1221
        %v1236 = vadd.f32 %v1176, %v1234
        %v1237 = vadd.f32 %v1177, %v1235
        %1238 = vrot.lane.b32.xlu0 %v802, 113
        %v1239 = vpop.permute.xlu0 %1238
        %1240 = vrot.lane.b32.xlu0 %v803, 113
        %v1241 = vpop.permute.xlu0 %1240
        %v1242 = vsel %vm667, %v1239, %v1241
        %v1243 = vsel %vm667, %v1241, %v1239
        %v1244 = vsel %vm674, %v1242, 0.0
        %v1245 = vsel %vm675, %v1243, 0.0
        %1246 = vset.pattern.permute.xlu0 16
        %1247 = vperm.xlu0 %1246, %v819
        %v1248 = vpop.permute.xlu0 %1247
        %v1250 = vmul.f32 %v1248, %v1244
        %v1251 = vmul.f32 %v1248, %v1245
        %v1252 = vadd.f32 %v1197, %v1250
        %v1253 = vadd.f32 %v1198, %v1251
        %1254 = vset.pattern.permute.xlu0 41
        %1255 = vperm.xlu0 %1254, %v819
        %v1256 = vpop.permute.xlu0 %1255
        %v1258 = vmul.f32 %v1256, %v1244
        %v1259 = vmul.f32 %v1256, %v1245
        %v1260 = vadd.f32 %v1205, %v1258
        %v1261 = vadd.f32 %v1206, %v1259
        %1262 = vrot.lane.b32.xlu0 %v802, 112
        %v1263 = vpop.permute.xlu0 %1262
        %1264 = vrot.lane.b32.xlu0 %v803, 112
        %v1265 = vpop.permute.xlu0 %1264
        %v1266 = vsel %vm698, %v1263, %v1265
        %v1267 = vsel %vm698, %v1265, %v1263
        %v1268 = vsel %vm703, %v1266, 0.0
        %v1269 = vsel %vm704, %v1267, 0.0
        %1270 = vset.pattern.permute.xlu0 17
        %1271 = vperm.xlu0 %1270, %v819
        %v1272 = vpop.permute.xlu0 %1271
        %v1274 = vmul.f32 %v1272, %v1268
        %v1275 = vmul.f32 %v1272, %v1269
        %v1276 = vadd.f32 %v1228, %v1274
        %v1277 = vadd.f32 %v1229, %v1275
        %1278 = vset.pattern.permute.xlu0 42
        %1279 = vperm.xlu0 %1278, %v819
        %v1280 = vpop.permute.xlu0 %1279
        %v1282 = vmul.f32 %v1280, %v1268
        %v1283 = vmul.f32 %v1280, %v1269
        %v1284 = vadd.f32 %v1236, %v1282
        %v1285 = vadd.f32 %v1237, %v1283
        %1286 = vrot.lane.b32.xlu0 %v802, 111
        %v1287 = vpop.permute.xlu0 %1286
        %1288 = vrot.lane.b32.xlu0 %v803, 111
        %v1289 = vpop.permute.xlu0 %1288
        %v1290 = vsel %vm727, %v1287, %v1289
        %v1291 = vsel %vm727, %v1289, %v1287
        %v1292 = vsel %vm734, %v1290, 0.0
        %v1293 = vsel %vm735, %v1291, 0.0
        %1294 = vset.pattern.permute.xlu0 18
        %1295 = vperm.xlu0 %1294, %v819
        %v1296 = vpop.permute.xlu0 %1295
        %v1298 = vmul.f32 %v1296, %v1292
        %v1299 = vmul.f32 %v1296, %v1293
        %v1300 = vadd.f32 %v1252, %v1298
        %v1301 = vadd.f32 %v1253, %v1299
        %1302 = vset.pattern.permute.xlu0 43
        %1303 = vperm.xlu0 %1302, %v819
        %v1304 = vpop.permute.xlu0 %1303
        %v1306 = vmul.f32 %v1304, %v1292
        %v1307 = vmul.f32 %v1304, %v1293
        %v1308 = vadd.f32 %v1260, %v1306
        %v1309 = vadd.f32 %v1261, %v1307
        %1310 = vrot.lane.b32.xlu0 %v802, 110
        %v1311 = vpop.permute.xlu0 %1310
        %1312 = vrot.lane.b32.xlu0 %v803, 110
        %v1313 = vpop.permute.xlu0 %1312
        %vm1314 = vcmp.lt.s32.totalorder %v386, 110
        %v1315 = vsel %vm1314, %v1311, %v1313
        %v1316 = vsel %vm1314, %v1313, %v1311
        %vm1317 = vmand %vm418, %vm436
        %vm1318 = vmand %vm419, %vm437
        %v1319 = vsel %vm1317, 1, 0
        %v1320 = vsel %vm1318, 1, 0
        %vm1321 = vcmp.eq.s32.totalorder %v1319, 1
        %vm1322 = vcmp.eq.s32.totalorder %v1320, 1
        %v1323 = vsel %vm1321, %v1315, 0.0
        %v1324 = vsel %vm1322, %v1316, 0.0
        %1325 = vset.pattern.permute.xlu0 19
        %1326 = vperm.xlu0 %1325, %v819
        %v1327 = vpop.permute.xlu0 %1326
        %v1329 = vmul.f32 %v1327, %v1323
        %v1330 = vmul.f32 %v1327, %v1324
        %v1331 = vadd.f32 %v1276, %v1329
        %v1332 = vadd.f32 %v1277, %v1330
        %1333 = vset.pattern.permute.xlu0 44
        %1334 = vperm.xlu0 %1333, %v819
        %v1335 = vpop.permute.xlu0 %1334
        %v1337 = vmul.f32 %v1335, %v1323
        %v1338 = vmul.f32 %v1335, %v1324
        %v1339 = vadd.f32 %v1284, %v1337
        %v1340 = vadd.f32 %v1285, %v1338
        %1341 = vrot.lane.b32.xlu0 %v802, 98
        %v1342 = vpop.permute.xlu0 %1341
        %1343 = vrot.lane.b32.xlu0 %v803, 98
        %v1344 = vpop.permute.xlu0 %1343
        %vm1345 = vcmp.lt.s32.totalorder %v386, 98
        %v1346 = vsel %vm1345, %v1342, %v1344
        %v1347 = vsel %vm1345, %v1344, %v1342
        %vm1348 = vmand %vm430, %vm400
        %vm1349 = vmand %vm431, %vm401
        %v1350 = vsel %vm1348, 1, 0
        %v1351 = vsel %vm1349, 1, 0
        %vm1352 = vcmp.eq.s32.totalorder %v1350, 1
        %vm1353 = vcmp.eq.s32.totalorder %v1351, 1
        %v1354 = vsel %vm1352, %v1346, 0.0
        %v1355 = vsel %vm1353, %v1347, 0.0
        %1356 = vset.pattern.permute.xlu0 20
        %1357 = vperm.xlu0 %1356, %v819
        %v1358 = vpop.permute.xlu0 %1357
        %v1360 = vmul.f32 %v1358, %v1354
        %v1361 = vmul.f32 %v1358, %v1355
        %v1362 = vadd.f32 %v1300, %v1360
        %v1363 = vadd.f32 %v1301, %v1361
        %1364 = vset.pattern.permute.xlu0 45
        %1365 = vperm.xlu0 %1364, %v819
        %v1366 = vpop.permute.xlu0 %1365
        %v1368 = vmul.f32 %v1366, %v1354
        %v1369 = vmul.f32 %v1366, %v1355
        %v1370 = vadd.f32 %v1308, %v1368
        %v1371 = vadd.f32 %v1309, %v1369
        %1372 = vrot.lane.b32.xlu0 %v802, 97
        %v1373 = vpop.permute.xlu0 %1372
        %1374 = vrot.lane.b32.xlu0 %v803, 97
        %v1375 = vpop.permute.xlu0 %1374
        %vm1376 = vcmp.lt.s32.totalorder %v386, 97
        %v1377 = vsel %vm1376, %v1373, %v1375
        %v1378 = vsel %vm1376, %v1375, %v1373
        %vm1379 = vmand %vm430, %vm412
        %vm1380 = vmand %vm431, %vm413
        %v1381 = vsel %vm1379, 1, 0
        %v1382 = vsel %vm1380, 1, 0
        %vm1383 = vcmp.eq.s32.totalorder %v1381, 1
        %vm1384 = vcmp.eq.s32.totalorder %v1382, 1
        %v1385 = vsel %vm1383, %v1377, 0.0
        %v1386 = vsel %vm1384, %v1378, 0.0
        %1387 = vset.pattern.permute.xlu0 21
        %1388 = vperm.xlu0 %1387, %v819
        %v1389 = vpop.permute.xlu0 %1388
        %v1391 = vmul.f32 %v1389, %v1385
        %v1392 = vmul.f32 %v1389, %v1386
        %v1393 = vadd.f32 %v1331, %v1391
        %v1394 = vadd.f32 %v1332, %v1392
        %1395 = vset.pattern.permute.xlu0 46
        %1396 = vperm.xlu0 %1395, %v819
        %v1397 = vpop.permute.xlu0 %1396
        %v1399 = vmul.f32 %v1397, %v1385
        %v1400 = vmul.f32 %v1397, %v1386
        %v1401 = vadd.f32 %v1339, %v1399
        %v1402 = vadd.f32 %v1340, %v1400
        %1403 = vrot.lane.b32.xlu0 %v802, 96
        %v1404 = vpop.permute.xlu0 %1403
        %1405 = vrot.lane.b32.xlu0 %v803, 96
        %v1406 = vpop.permute.xlu0 %1405
        %vm1407 = vcmp.lt.s32.totalorder %v386, 96
        %v1408 = vsel %vm1407, %v1404, %v1406
        %v1409 = vsel %vm1407, %v1406, %v1404
        %v1410 = vsel %vm430, 1, 0
        %v1411 = vsel %vm431, 1, 0
        %vm1412 = vcmp.eq.s32.totalorder %v1410, 1
        %vm1413 = vcmp.eq.s32.totalorder %v1411, 1
        %v1414 = vsel %vm1412, %v1408, 0.0
        %v1415 = vsel %vm1413, %v1409, 0.0
        %1416 = vset.pattern.permute.xlu0 22
        %1417 = vperm.xlu0 %1416, %v819
        %v1418 = vpop.permute.xlu0 %1417
        %v1420 = vmul.f32 %v1418, %v1414
        %v1421 = vmul.f32 %v1418, %v1415
        %v1422 = vadd.f32 %v1362, %v1420
        %v1423 = vadd.f32 %v1363, %v1421
        %1424 = vset.pattern.permute.xlu0 47
        %1425 = vperm.xlu0 %1424, %v819
        %v1426 = vpop.permute.xlu0 %1425
        %v1428 = vmul.f32 %v1426, %v1414
        %v1429 = vmul.f32 %v1426, %v1415
        %v1430 = vadd.f32 %v1370, %v1428
        %v1431 = vadd.f32 %v1371, %v1429
        %1432 = vrot.lane.b32.xlu0 %v802, 95
        %v1433 = vpop.permute.xlu0 %1432
        %1434 = vrot.lane.b32.xlu0 %v803, 95
        %v1435 = vpop.permute.xlu0 %1434
        %vm1436 = vcmp.lt.s32.totalorder %v386, 95
        %v1437 = vsel %vm1436, %v1433, %v1435
        %v1438 = vsel %vm1436, %v1435, %v1433
        %vm1439 = vmand %vm430, %vm424
        %vm1440 = vmand %vm431, %vm425
        %v1441 = vsel %vm1439, 1, 0
        %v1442 = vsel %vm1440, 1, 0
        %vm1443 = vcmp.eq.s32.totalorder %v1441, 1
        %vm1444 = vcmp.eq.s32.totalorder %v1442, 1
        %v1445 = vsel %vm1443, %v1437, 0.0
        %v1446 = vsel %vm1444, %v1438, 0.0
        %1447 = vset.pattern.permute.xlu0 23
        %1448 = vperm.xlu0 %1447, %v819
        %v1449 = vpop.permute.xlu0 %1448
        %v1451 = vmul.f32 %v1449, %v1445
        %v1452 = vmul.f32 %v1449, %v1446
        %v1453 = vadd.f32 %v1393, %v1451
        %v1454 = vadd.f32 %v1394, %v1452
        %1455 = vset.pattern.permute.xlu0 48
        %1456 = vperm.xlu0 %1455, %v819
        %v1457 = vpop.permute.xlu0 %1456
        %v1459 = vmul.f32 %v1457, %v1445
        %v1460 = vmul.f32 %v1457, %v1446
        %v1461 = vadd.f32 %v1401, %v1459
        %v1462 = vadd.f32 %v1402, %v1460
        %1463 = vrot.lane.b32.xlu0 %v802, 94
        %v1464 = vpop.permute.xlu0 %1463
        %1465 = vrot.lane.b32.xlu0 %v803, 94
        %v1466 = vpop.permute.xlu0 %1465
        %vm1467 = vcmp.lt.s32.totalorder %v386, 94
        %v1468 = vsel %vm1467, %v1464, %v1466
        %v1469 = vsel %vm1467, %v1466, %v1464
        %vm1470 = vmand %vm430, %vm436
        %vm1471 = vmand %vm431, %vm437
        %v1472 = vsel %vm1470, 1, 0
        %v1473 = vsel %vm1471, 1, 0
        %vm1474 = vcmp.eq.s32.totalorder %v1472, 1
        %vm1475 = vcmp.eq.s32.totalorder %v1473, 1
        %v1476 = vsel %vm1474, %v1468, 0.0
        %v1477 = vsel %vm1475, %v1469, 0.0
        %1478 = vset.pattern.permute.xlu0 24
        %1479 = vperm.xlu0 %1478, %v819
        %v1480 = vpop.permute.xlu0 %1479
        %v1482 = vmul.f32 %v1480, %v1476
        %v1483 = vmul.f32 %v1480, %v1477
        %v1484 = vadd.f32 %v1422, %v1482
        %v1485 = vadd.f32 %v1423, %v1483
        %1486 = vset.pattern.permute.xlu0 49
        %1487 = vperm.xlu0 %1486, %v819
        %v1488 = vpop.permute.xlu0 %1487
        %v1490 = vmul.f32 %v1488, %v1476
        %v1491 = vmul.f32 %v1488, %v1477
        %v1492 = vadd.f32 %v1430, %v1490
        %v1493 = vadd.f32 %v1431, %v1491
        %v1494 = vadd.f32 %v1484, %v1453
        %v1495 = vadd.f32 %v1485, %v1454
        %v1496 = vrot.slane %v1494, 4
        %v1497 = vadd.f32 %v1494, %v1496
        %v1498 = vrot.slane %v1497, 2
        %v1499 = vadd.f32 %v1497, %v1498
        %v1500 = vrot.slane %v1499, 1
        %v1501 = vadd.f32 %v1499, %v1500
        %v1502 = vrot.slane %v1495, 4
        %v1503 = vadd.f32 %v1495, %v1502
        %v1504 = vrot.slane %v1503, 2
        %v1505 = vadd.f32 %v1503, %v1504
        %v1506 = vrot.slane %v1505, 1
        %v1507 = vadd.f32 %v1505, %v1506
        %s1508 = sld [smem:[#allocation6]]
        %v1509 = vstv %s1508
        %v1510 = vadd.f32 %v1501, %v1509
        %v1511 = vadd.f32 %v1507, %v1509
        %v1512 = vmax.f32 %v1510, 0.0
        %v1513 = vmax.f32 %v1511, 0.0
        %v1514 = vadd.f32 %v1492, %v1461
        %v1515 = vadd.f32 %v1493, %v1462
        %v1516 = vrot.slane %v1514, 4
        %v1517 = vadd.f32 %v1514, %v1516
        %v1518 = vrot.slane %v1517, 2
        %v1519 = vadd.f32 %v1517, %v1518
        %v1520 = vrot.slane %v1519, 1
        %v1521 = vadd.f32 %v1519, %v1520
        %v1522 = vrot.slane %v1515, 4
        %v1523 = vadd.f32 %v1515, %v1522
        %v1524 = vrot.slane %v1523, 2
        %v1525 = vadd.f32 %v1523, %v1524
        %v1526 = vrot.slane %v1525, 1
        %v1527 = vadd.f32 %v1525, %v1526
        %s1528 = sld [smem:[#allocation6 + $0x1]]
        %v1529 = vstv %s1528
        %v1530 = vadd.f32 %v1521, %v1529
        %v1531 = vadd.f32 %v1527, %v1529
        %v1532 = vmax.f32 %v1530, 0.0
        %v1533 = vmax.f32 %v1531, 0.0
        %vm1534 = vcmask 1040384
        %v1535 = vsel %vm1534, %v477, %v497
        %v1536 = vsel %vm1534, %v478, %v498
        %vm1537 = vcmask 1041408
        %v1538 = vsel %vm1537, %v1535, %v775
        %v1539 = vsel %vm1537, %v1536, %v776
        %vm1540 = vcmask 1042432
        %v1541 = vsel %vm1540, %v1538, %v797
        %v1542 = vsel %vm1540, %v1539, %v798
        %v1543 = vsel %vm458, %v1541, %v1512
        %v1544 = vsel %vm458, %v1542, %v1513
        %v1545 = vsel %vm501, %v1543, %v1532
        %v1546 = vsel %vm501, %v1544, %v1533
        %v1547 = vld [vmem:[%s7] sm:$0x3f]
        %1549 = vset.pattern.permute.xlu0 0
        %1550 = vperm.xlu0 %1549, %v1547
        %v1551 = vpop.permute.xlu0 %1550
        %v1553 = vmul.f32 %v1551, %v1545
        %v1554 = vmul.f32 %v1551, %v1546
        %1555 = vset.pattern.permute.xlu0 1
        %1556 = vperm.xlu0 %1555, %v1547
        %v1557 = vpop.permute.xlu0 %1556
        %v1559 = vmul.f32 %v1557, %v1545
        %v1560 = vmul.f32 %v1557, %v1546
        %1561 = vset.pattern.permute.xlu0 2
        %1562 = vperm.xlu0 %1561, %v1547
        %v1563 = vpop.permute.xlu0 %1562
        %v1565 = vmul.f32 %v1563, %v1545
        %v1566 = vmul.f32 %v1563, %v1546
        %1567 = vset.pattern.permute.xlu0 3
        %1568 = vperm.xlu0 %1567, %v1547
        %v1569 = vpop.permute.xlu0 %1568
        %v1571 = vmul.f32 %v1569, %v1545
        %v1572 = vmul.f32 %v1569, %v1546
        %1573 = vset.pattern.permute.xlu0 4
        %1574 = vperm.xlu0 %1573, %v1547
        %v1575 = vpop.permute.xlu0 %1574
        %v1577 = vmul.f32 %v1575, %v1545
        %v1578 = vmul.f32 %v1575, %v1546
        %1579 = vset.pattern.permute.xlu0 5
        %1580 = vperm.xlu0 %1579, %v1547
        %v1581 = vpop.permute.xlu0 %1580
        %v1583 = vmul.f32 %v1581, %v1545
        %v1584 = vmul.f32 %v1581, %v1546
        %v1585 = vsel %vm756, %v1553, 0.0
        %v1586 = vrot.slane %v1585, 4
        %v1587 = vadd.f32 %v1585, %v1586
        %v1588 = vrot.slane %v1587, 2
        %v1589 = vadd.f32 %v1587, %v1588
        %v1590 = vrot.slane %v1589, 1
        %v1591 = vadd.f32 %v1589, %v1590
        %v1592 = vsel %vm756, %v1554, 0.0
        %v1593 = vrot.slane %v1592, 4
        %v1594 = vadd.f32 %v1592, %v1593
        %v1595 = vrot.slane %v1594, 2
        %v1596 = vadd.f32 %v1594, %v1595
        %v1597 = vrot.slane %v1596, 1
        %v1598 = vadd.f32 %v1596, %v1597
        %s1599 = sld [smem:[#allocation7]]
        %v1600 = vstv %s1599
        %v1601 = vadd.f32 %v1591, %v1600
        %v1602 = vadd.f32 %v1598, %v1600
        %v1603 = vmax.f32 %v1601, 0.0
        %v1604 = vmax.f32 %v1602, 0.0
        %v1605 = vsel %vm756, %v1559, 0.0
        %v1606 = vrot.slane %v1605, 4
        %v1607 = vadd.f32 %v1605, %v1606
        %v1608 = vrot.slane %v1607, 2
        %v1609 = vadd.f32 %v1607, %v1608
        %v1610 = vrot.slane %v1609, 1
        %v1611 = vadd.f32 %v1609, %v1610
        %v1612 = vsel %vm756, %v1560, 0.0
        %v1613 = vrot.slane %v1612, 4
        %v1614 = vadd.f32 %v1612, %v1613
        %v1615 = vrot.slane %v1614, 2
        %v1616 = vadd.f32 %v1614, %v1615
        %v1617 = vrot.slane %v1616, 1
        %v1618 = vadd.f32 %v1616, %v1617
        %s1619 = sld [smem:[#allocation7 + $0x1]]
        %v1620 = vstv %s1619
        %v1621 = vadd.f32 %v1611, %v1620
        %v1622 = vadd.f32 %v1618, %v1620
        %v1623 = vmax.f32 %v1621, 0.0
        %v1624 = vmax.f32 %v1622, 0.0
        %v1625 = vsel %vm756, %v1565, 0.0
        %v1626 = vrot.slane %v1625, 4
        %v1627 = vadd.f32 %v1625, %v1626
        %v1628 = vrot.slane %v1627, 2
        %v1629 = vadd.f32 %v1627, %v1628
        %v1630 = vrot.slane %v1629, 1
        %v1631 = vadd.f32 %v1629, %v1630
        %v1632 = vsel %vm756, %v1566, 0.0
        %v1633 = vrot.slane %v1632, 4
        %v1634 = vadd.f32 %v1632, %v1633
        %v1635 = vrot.slane %v1634, 2
        %v1636 = vadd.f32 %v1634, %v1635
        %v1637 = vrot.slane %v1636, 1
        %v1638 = vadd.f32 %v1636, %v1637
        %s1639 = sld [smem:[#allocation7 + $0x2]]
        %v1640 = vstv %s1639
        %v1641 = vadd.f32 %v1631, %v1640
        %v1642 = vadd.f32 %v1638, %v1640
        %v1643 = vmax.f32 %v1641, 0.0
        %v1644 = vmax.f32 %v1642, 0.0
        %v1645 = vsel %vm756, %v1571, 0.0
        %v1646 = vrot.slane %v1645, 4
        %v1647 = vadd.f32 %v1645, %v1646
        %v1648 = vrot.slane %v1647, 2
        %v1649 = vadd.f32 %v1647, %v1648
        %v1650 = vrot.slane %v1649, 1
        %v1651 = vadd.f32 %v1649, %v1650
        %v1652 = vsel %vm756, %v1572, 0.0
        %v1653 = vrot.slane %v1652, 4
        %v1654 = vadd.f32 %v1652, %v1653
        %v1655 = vrot.slane %v1654, 2
        %v1656 = vadd.f32 %v1654, %v1655
        %v1657 = vrot.slane %v1656, 1
        %v1658 = vadd.f32 %v1656, %v1657
        %s1659 = sld [smem:[#allocation7 + $0x3]]
        %v1660 = vstv %s1659
        %v1661 = vadd.f32 %v1651, %v1660
        %v1662 = vadd.f32 %v1658, %v1660
        %v1663 = vmax.f32 %v1661, 0.0
        %v1664 = vmax.f32 %v1662, 0.0
        %v1665 = vsel %vm756, %v1577, 0.0
        %v1666 = vrot.slane %v1665, 4
        %v1667 = vadd.f32 %v1665, %v1666
        %v1668 = vrot.slane %v1667, 2
        %v1669 = vadd.f32 %v1667, %v1668
        %v1670 = vrot.slane %v1669, 1
        %v1671 = vadd.f32 %v1669, %v1670
        %v1672 = vsel %vm756, %v1578, 0.0
        %v1673 = vrot.slane %v1672, 4
        %v1674 = vadd.f32 %v1672, %v1673
        %v1675 = vrot.slane %v1674, 2
        %v1676 = vadd.f32 %v1674, %v1675
        %v1677 = vrot.slane %v1676, 1
        %v1678 = vadd.f32 %v1676, %v1677
        %s1679 = sld [smem:[#allocation7 + $0x4]]
        %v1680 = vstv %s1679
        %v1681 = vadd.f32 %v1671, %v1680
        %v1682 = vadd.f32 %v1678, %v1680
        %v1683 = vmax.f32 %v1681, 0.0
        %v1684 = vmax.f32 %v1682, 0.0
        %v1685 = vsel %vm756, %v1583, 0.0
        %v1686 = vrot.slane %v1685, 4
        %v1687 = vadd.f32 %v1685, %v1686
        %v1688 = vrot.slane %v1687, 2
        %v1689 = vadd.f32 %v1687, %v1688
        %v1690 = vrot.slane %v1689, 1
        %v1691 = vadd.f32 %v1689, %v1690
        %v1692 = vsel %vm756, %v1584, 0.0
        %v1693 = vrot.slane %v1692, 4
        %v1694 = vadd.f32 %v1692, %v1693
        %v1695 = vrot.slane %v1694, 2
        %v1696 = vadd.f32 %v1694, %v1695
        %v1697 = vrot.slane %v1696, 1
        %v1698 = vadd.f32 %v1696, %v1697
        %s1699 = sld [smem:[#allocation7 + $0x5]]
        %v1700 = vstv %s1699
        %v1701 = vadd.f32 %v1691, %v1700
        %v1702 = vadd.f32 %v1698, %v1700
        %v1703 = vmax.f32 %v1701, 0.0
        %v1704 = vmax.f32 %v1702, 0.0
        %v1705 = vsel %vm1534, %v1603, %v1623
        %v1706 = vsel %vm1534, %v1604, %v1624
        %v1707 = vsel %vm1537, %v1705, %v1643
        %v1708 = vsel %vm1537, %v1706, %v1644
        %v1709 = vsel %vm1540, %v1707, %v1663
        %v1710 = vsel %vm1540, %v1708, %v1664
        %v1711 = vsel %vm458, %v1709, %v1683
        %v1712 = vsel %vm458, %v1710, %v1684
        %v1713 = vsel %vm501, %v1711, %v1703
        %v1714 = vsel %vm501, %v1712, %v1704
        %1715 = vst [vmem:[%s384] sm:$0x3f] %v1713
        %1716 = vst [vmem:[%s384 + $0x8] sm:$0x3f] %v1714
        %p1717 = scmp.lt.s32.totalorder %s23, 1
        %s1718 = scalar_select %p1717, %s23, 1
        %s1719 = smul.addr %s1718, 2
        %s1720 = smul.addr %s1719, 8
        %s1721 = scalar_lea.vmem %s9, %s1720
        // Predicated region
        $region73: #{multi_scale_conv_forward.1} parent=55 // pred_check
          %p1722 = pneg %p235
        $region74: #{multi_scale_conv_forward.1} parent=55 // pred_check_branch
          %1724 = sbr.rel (%p1722) target = $region76
        $region75: #{multi_scale_conv_forward.1} parent=55 // pred_region
          _
        $region76: #{multi_scale_conv_forward.1} parent=55 // pred_fallthru
          _
      $region56: #{multi_scale_conv_forward.1} parent=5 // pred_fallthru
        _
      %p1725 = scmp.le.s32.totalorder 2, %s18
      // Predicated region
      $region77: #{multi_scale_conv_forward.1} parent=5 // pred_check
        %p1726 = pneg %p1725
      $region78: #{multi_scale_conv_forward.1} parent=5 // pred_check_branch
        %1728 = sbr.rel (%p1726) target = $region80
      $region79: #{multi_scale_conv_forward.1} parent=5 // pred_region
        %s1729 = ssub.s32 %s18, 2
        // Predicated region
        $region81: #{multi_scale_conv_forward.1} parent=79 // pred_check
          %p1730 = pneg %p241
        $region82: #{multi_scale_conv_forward.1} parent=79 // pred_check_branch
          %1732 = sbr.rel (%p1730) target = $region84
        $region83: #{multi_scale_conv_forward.1} parent=79 // pred_region
          %p1733 = scmp.lt.s32.totalorder %s24, 1
          %s1734 = scalar_select %p1733, %s24, 1
          %s1735 = smul.addr %s1734, 2
          %s1736 = smul.addr %s1735, 8
          %s1737 = scalar_lea.vmem %s9, %s1736
        $region84: #{multi_scale_conv_forward.1} parent=79 // pred_fallthru
          _
      $region80: #{multi_scale_conv_forward.1} parent=5 // pred_fallthru
        _
    $region6: #{multi_scale_conv_forward.1} parent=1 // loop_footer
      %s22 = sadd.s32 1, %s18
    $region7: #{multi_scale_conv_forward.1} parent=1 // loop_footer_branch
      %17 = sbr.rel target = $region3
    $region8: #{multi_scale_conv_forward.1} parent=1 // loop_exit
      _
    %1738 = vsyncpa [#allocation3], 1
    %s1739 = scalar_lea.sflag [#allocation3], 1
    %1740 = vsyncpa %s1739, 1
    %1741 = vsyncpa [#allocation5], 1
    %1742 = vsyncpa [#allocation8], 1

</llo_original>
